<compile_context>
chip_gen: v6e
topology: v6e:2x2x1
jax: 0.10.0
libtpu: 0.0.40
codegen_flags: <defaults>
</compile_context>

<pallas_src>
import jax
import jax.numpy as jnp
from jax.experimental import pallas as pl
from jax.experimental.pallas import tpu as pltpu


def _round_up(v, m):
    return (v + m - 1) // m * m


def _pick_vmem_limit():
    """Generation-aware scoped-VMEM limit: ~75% of physical, capped at 96 MiB."""
    cap = 64 * 1024 * 1024                       # conservative fallback (v7x physical)
    try:
        cap = int(pltpu.get_tpu_info().vmem_capacity_bytes)
    except Exception:
        pass
    return int(min(max(cap * 3 // 4, 32 * 1024 * 1024), 96 * 1024 * 1024))


# ----------------------------------------------------------------------------
# Pallas kernel: 3x3 same-conv on one lane-dense row tile
# ----------------------------------------------------------------------------
def _make_conv3x3_kernel(th, wpad, cin_p, act_fn=None):
    lw = th * wpad                               # flattened spatial extent of one tile

    def kernel(xa_ref, xh_ref, w_ref, b_ref, o_ref):
        # xa_ref: (1, cin_p, th*wpad)   bf16, padded rows [t*th, t*th+th), flattened
        # xh_ref: (1, cin_p, 2*wpad)    bf16, halo rows  [t*th+th, t*th+th+2)
        # w_ref : (9, cout_p, cin_p)    bf16, tap-major packed weights (tap = dx*3 + dy)
        # b_ref : (cout_p, 1)           f32 bias
        # o_ref : (1, cout_p, th*wpad)  f32, lane-dense store
        cout_p = o_ref.shape[1]

        # (th + 2)-row flattened window; lw % 128 == 0 so the concat is aligned.
        win0 = jnp.concatenate([xa_ref[0], xh_ref[0]], axis=-1)     # (cin_p, (th+2)*wpad)

        acc = jnp.zeros((cout_p, lw), jnp.float32)
        for dx in range(3):
            if dx == 0:
                win = win0
            else:
                # Bake the dx lane shift once per dx and share it across the 3 dy
                # taps (this replaces 6 per-tap misaligned slices + the 9x xcol
                # materialization).  The trailing zero columns only reach output
                # columns >= wpad-2 >= W, which the wrapper crops, so correctness
                # is unaffected.  (pltpu.roll(win0, -dx, axis=-1) expresses the
                # same shift directly on the XLU; the slice+concat below lowers
                # to the equivalent lane rotate with trivially-safe wrap.)
                win = jnp.concatenate(
                    [win0[:, dx:], jnp.zeros((cin_p, dx), win0.dtype)], axis=-1)
            for dy in range(3):
                # wpad-aligned slice of the shifted window: no extra copy
                # (only a 64-lane offset when wpad % 128 == 64).
                xs = win[:, dy * wpad: dy * wpad + lw]               # (cin_p, lw) bf16
                acc = acc + jnp.dot(w_ref[dx * 3 + dy], xs,
                                    preferred_element_type=jnp.float32)

        acc = acc + b_ref[...]                                       # f32 bias add
        if act_fn is not None:
            acc = act_fn(acc)                                        # fused activation
        o_ref[0] = acc.astype(o_ref.dtype)

    return kernel


# ----------------------------------------------------------------------------
# Wrapper: NCHW 3x3 conv, stride 1, padding 1, groups 1 — one pallas_call
# ----------------------------------------------------------------------------
def conv2d_3x3_same(x, w, bias, *, row_tile=32, act_fn=None):
    B, Cin, H, W = x.shape
    Cout = w.shape[0]
    cin_p = _round_up(Cin, 8)
    cout_p = _round_up(Cout, 8)
    # 2*wpad % 128 == 0 (halo block) and, with th even, th*wpad % 128 == 0.
    wpad = _round_up(W + 2, 64)

    # Tile height from the actual per-row VMEM residents:
    #   2x double-buffered bf16 input + 2x f32 output blocks, the base window,
    #   up to two shifted windows and the f32 accumulator.
    vmem_limit = _pick_vmem_limit()
    bytes_per_row = wpad * (12 * cin_p + 14 * cout_p)
    th = min(row_tile, max(2, (vmem_limit // 2) // bytes_per_row), _round_up(H, 2))
    th = max(2, th - (th % 2))                   # even th: halo indexing + 128-lane rule
    ht = -(-H // th)
    lw = th * wpad
    hp_rows = ht * th + 2                        # minimal: 1 top halo + H + bottom halo/pad

    # One-time zero pad in bf16: 1-pixel top/left halo, bottom/right only up to
    # what the tile grid needs, channels to a multiple of 8.
    xp = jnp.pad(x.astype(jnp.bfloat16),
                 ((0, 0), (0, cin_p - Cin), (1, hp_rows - H - 1), (1, wpad - W - 1)))
    xp_flat = xp.reshape(B, cin_p, hp_rows * wpad)

    # Pack (Cout, Cin, 3, 3) -> (9, cout_p, cin_p) bf16, tap index = kx*3 + ky.
    wp = jnp.zeros((cout_p, cin_p, 3, 3), jnp.float32).at[:Cout, :Cin].set(
        w.astype(jnp.float32))
    w_packed = wp.transpose(3, 2, 0, 1).reshape(9, cout_p, cin_p).astype(jnp.bfloat16)
    b_col = jnp.zeros((cout_p, 1), jnp.float32).at[:Cout, 0].set(
        bias.astype(jnp.float32))

    out_flat = pl.pallas_call(
        _make_conv3x3_kernel(th, wpad, cin_p, act_fn),
        out_shape=jax.ShapeDtypeStruct((B, cout_p, ht * lw), jnp.float32),
        grid=(B, ht),                            # both parallel (v7x megacore split)
        in_specs=[
            # Main row tile: padded rows [t*th, t*th+th).
            pl.BlockSpec((1, cin_p, lw), lambda b, t: (b, 0, t)),
            # 2-row halo: padded rows [(t+1)*th, (t+1)*th+2).
            pl.BlockSpec((1, cin_p, 2 * wpad),
                         lambda b, t: (b, 0, (t + 1) * (th // 2))),
            pl.BlockSpec((9, cout_p, cin_p), lambda b, t: (0, 0, 0)),
            pl.BlockSpec((cout_p, 1), lambda b, t: (0, 0)),
        ],
        out_specs=pl.BlockSpec((1, cout_p, lw), lambda b, t: (b, 0, t)),
        compiler_params=pltpu.CompilerParams(
            dimension_semantics=("parallel", "parallel"),
            vmem_limit_bytes=vmem_limit),
    )(xp_flat, xp_flat, w_packed, b_col)

    out = out_flat.reshape(B, cout_p, ht * th, wpad)
    return out[:, :Cout, :H, :W]


# ----------------------------------------------------------------------------
# MetaConv2d forward
# ----------------------------------------------------------------------------
def meta_conv2d(params, x, lamb):
    """MetaConv2d forward: kernel_size=3, padding=1, stride=1, groups=1,
    bias=True, act_func=nn.Identity (module defaults)."""
    Cout = params["lin_b_b"].shape[0]
    Cin = x.shape[1]
    # Linear(1, Cout*Cin*9)(lamb) and Linear(1, Cout)(lamb): tiny affines, plain JAX.
    wvec = params["lin_w_w"][:, 0] * lamb[0] + params["lin_w_b"]
    w = wvec.reshape(Cout, Cin, 3, 3)
    bias = params["lin_b_w"][:, 0] * lamb[0] + params["lin_b_b"]
    # TODO(synk): non-default torch act_func modules must be re-expressed as
    # jnp callables (e.g. jax.nn.gelu) and passed as act_fn to fuse in-kernel.
    return conv2d_3x3_same(x, w, bias)


# ----------------------------------------------------------------------------
if __name__ == "__main__":
    key = jax.random.PRNGKey(0)
    kw, kwb, kbw, kbb, kx = jax.random.split(key, 5)

    B, Cin, H, W = 2, 4, 16, 16
    Cout = 8
    n = Cout * Cin * 9
    params = {
        "lin_w_w": 0.05 * jax.random.normal(kw, (n, 1), jnp.float32),
        "lin_w_b": 0.05 * jax.random.normal(kwb, (n,), jnp.float32),
        "lin_b_w": 0.05 * jax.random.normal(kbw, (Cout, 1), jnp.float32),
        "lin_b_b": 0.05 * jax.random.normal(kbb, (Cout,), jnp.float32),
    }
    x = jax.random.normal(kx, (B, Cin, H, W), jnp.float32)
    lamb = jnp.array([0.5], jnp.float32)

    meta_fn = jax.jit(meta_conv2d)
    out = jax.block_until_ready(meta_fn(params, x, lamb))
    assert out.shape == (B, Cout, H, W)
    assert bool(jnp.all(jnp.isfinite(out)))

    # Reference check against a plain-JAX f32 convolution (bf16 MXU inputs in
    # the kernel -> loose tolerance).
    w_full = (params["lin_w_w"][:, 0] * lamb[0] + params["lin_w_b"]).reshape(
        Cout, Cin, 3, 3)
    b_full = params["lin_b_w"][:, 0] * lamb[0] + params["lin_b_b"]
    ref = jax.lax.conv_general_dilated(
        x, w_full, window_strides=(1, 1), padding=((1, 1), (1, 1)),
        dimension_numbers=("NCHW", "OIHW", "NCHW")) + b_full[None, :, None, None]
    err = float(jnp.max(jnp.abs(out - ref)))
    assert err < 5e-2, f"max abs err {err}"

    # Also exercise the multi-row-tile (halo) path explicitly.
    out2 = jax.block_until_ready(conv2d_3x3_same(x, w_full, b_full, row_tile=4))
    err2 = float(jnp.max(jnp.abs(out2 - ref)))
    assert err2 < 5e-2, f"multi-tile max abs err {err2}"

    print("KERNEL_OK")
</pallas_src>

<mosaic_0001>
module attributes {stable_mosaic.version = 11 : i64} {
  func.func @kernel(%arg0: i32, %arg1: i32, %arg2: memref<1x8x1024xbf16, #tpu.memory_space<vmem>>, %arg3: memref<1x8x128xbf16, #tpu.memory_space<vmem>>, %arg4: memref<9x8x8xbf16, #tpu.memory_space<vmem>>, %arg5: memref<8x1xf32, #tpu.memory_space<vmem>>, %arg6: memref<1x8x1024xf32, #tpu.memory_space<vmem>>) attributes {dimension_semantics = [#tpu.dimension_semantics<parallel>, #tpu.dimension_semantics<parallel>], iteration_bounds = array<i64: 2, 1>, scalar_prefetch = 0 : i64, scratch_operands = 0 : i64, tpu.core_type = #tpu.core_type<tc>, window_params = [{transform_indices = @transform_0, window_bounds = array<i64: 1, 8, 1024>}, {transform_indices = @transform_1, window_bounds = array<i64: 1, 8, 128>}, {pipeline_mode = #tpu.pipeline_mode<synchronous>, transform_indices = @transform_2, window_bounds = array<i64: 9, 8, 8>}, {pipeline_mode = #tpu.pipeline_mode<synchronous>, transform_indices = @transform_3, window_bounds = array<i64: 8, 1>}, {transform_indices = @transform_4, window_bounds = array<i64: 1, 8, 1024>}]} {
    %c0 = arith.constant 0 : index
    %c0_0 = arith.constant 0 : index
    %c0_1 = arith.constant 0 : index
    %0 = vector.load %arg2[%c0, %c0_0, %c0_1] : memref<1x8x1024xbf16, #tpu.memory_space<vmem>>, vector<1x8x1024xbf16>
    %1 = vector.shape_cast %0 : vector<1x8x1024xbf16> to vector<8x1024xbf16>
    %c0_2 = arith.constant 0 : index
    %c0_3 = arith.constant 0 : index
    %c0_4 = arith.constant 0 : index
    %2 = vector.load %arg3[%c0_2, %c0_3, %c0_4] : memref<1x8x128xbf16, #tpu.memory_space<vmem>>, vector<1x8x128xbf16>
    %3 = vector.shape_cast %2 : vector<1x8x128xbf16> to vector<8x128xbf16>
    %4 = tpu.concatenate %1, %3 in 1 : vector<8x1024xbf16>, vector<8x128xbf16> -> vector<8x1152xbf16>
    %cst = arith.constant 0.000000e+00 : f32
    %5 = vector.broadcast %cst : f32 to vector<8x1024xf32>
    %6 = vector.extract_strided_slice %4 {offsets = [0, 0], sizes = [8, 1024], strides = [1, 1]} : vector<8x1152xbf16> to vector<8x1024xbf16>
    %c0_5 = arith.constant 0 : index
    %c0_6 = arith.constant 0 : index
    %c0_7 = arith.constant 0 : index
    %7 = vector.load %arg4[%c0_5, %c0_6, %c0_7] : memref<9x8x8xbf16, #tpu.memory_space<vmem>>, vector<1x8x8xbf16>
    %8 = vector.shape_cast %7 : vector<1x8x8xbf16> to vector<8x8xbf16>
    %cst_8 = arith.constant dense<0.000000e+00> : vector<8x1024xf32>
    %9 = tpu.matmul %8, %6, %cst_8 {dimension_numbers = #tpu.dot_dimension_numbers<[1], [0], [0], [1], [0, 0, 1, 1], [], []>} : vector<8x8xbf16>, vector<8x1024xbf16>, vector<8x1024xf32> -> vector<8x1024xf32>
    %10 = arith.addf %5, %9 : vector<8x1024xf32>
    %11 = vector.extract_strided_slice %4 {offsets = [0, 64], sizes = [8, 1024], strides = [1, 1]} : vector<8x1152xbf16> to vector<8x1024xbf16>
    %c1 = arith.constant 1 : index
    %c0_9 = arith.constant 0 : index
    %c0_10 = arith.constant 0 : index
    %12 = vector.load %arg4[%c1, %c0_9, %c0_10] : memref<9x8x8xbf16, #tpu.memory_space<vmem>>, vector<1x8x8xbf16>
    %13 = vector.shape_cast %12 : vector<1x8x8xbf16> to vector<8x8xbf16>
    %cst_11 = arith.constant dense<0.000000e+00> : vector<8x1024xf32>
    %14 = tpu.matmul %13, %11, %cst_11 {dimension_numbers = #tpu.dot_dimension_numbers<[1], [0], [0], [1], [0, 0, 1, 1], [], []>} : vector<8x8xbf16>, vector<8x1024xbf16>, vector<8x1024xf32> -> vector<8x1024xf32>
    %15 = arith.addf %10, %14 : vector<8x1024xf32>
    %16 = vector.extract_strided_slice %4 {offsets = [0, 128], sizes = [8, 1024], strides = [1, 1]} : vector<8x1152xbf16> to vector<8x1024xbf16>
    %c2 = arith.constant 2 : index
    %c0_12 = arith.constant 0 : index
    %c0_13 = arith.constant 0 : index
    %17 = vector.load %arg4[%c2, %c0_12, %c0_13] : memref<9x8x8xbf16, #tpu.memory_space<vmem>>, vector<1x8x8xbf16>
    %18 = vector.shape_cast %17 : vector<1x8x8xbf16> to vector<8x8xbf16>
    %cst_14 = arith.constant dense<0.000000e+00> : vector<8x1024xf32>
    %19 = tpu.matmul %18, %16, %cst_14 {dimension_numbers = #tpu.dot_dimension_numbers<[1], [0], [0], [1], [0, 0, 1, 1], [], []>} : vector<8x8xbf16>, vector<8x1024xbf16>, vector<8x1024xf32> -> vector<8x1024xf32>
    %20 = arith.addf %15, %19 : vector<8x1024xf32>
    %21 = vector.extract_strided_slice %4 {offsets = [0, 1], sizes = [8, 1151], strides = [1, 1]} : vector<8x1152xbf16> to vector<8x1151xbf16>
    %cst_15 = arith.constant 0.000000e+00 : bf16
    %22 = vector.broadcast %cst_15 : bf16 to vector<8x1xbf16>
    %23 = tpu.concatenate %21, %22 in 1 : vector<8x1151xbf16>, vector<8x1xbf16> -> vector<8x1152xbf16>
    %24 = vector.extract_strided_slice %23 {offsets = [0, 0], sizes = [8, 1024], strides = [1, 1]} : vector<8x1152xbf16> to vector<8x1024xbf16>
    %c3 = arith.constant 3 : index
    %c0_16 = arith.constant 0 : index
    %c0_17 = arith.constant 0 : index
    %25 = vector.load %arg4[%c3, %c0_16, %c0_17] : memref<9x8x8xbf16, #tpu.memory_space<vmem>>, vector<1x8x8xbf16>
    %26 = vector.shape_cast %25 : vector<1x8x8xbf16> to vector<8x8xbf16>
    %cst_18 = arith.constant dense<0.000000e+00> : vector<8x1024xf32>
    %27 = tpu.matmul %26, %24, %cst_18 {dimension_numbers = #tpu.dot_dimension_numbers<[1], [0], [0], [1], [0, 0, 1, 1], [], []>} : vector<8x8xbf16>, vector<8x1024xbf16>, vector<8x1024xf32> -> vector<8x1024xf32>
    %28 = arith.addf %20, %27 : vector<8x1024xf32>
    %29 = vector.extract_strided_slice %23 {offsets = [0, 64], sizes = [8, 1024], strides = [1, 1]} : vector<8x1152xbf16> to vector<8x1024xbf16>
    %c4 = arith.constant 4 : index
    %c0_19 = arith.constant 0 : index
    %c0_20 = arith.constant 0 : index
    %30 = vector.load %arg4[%c4, %c0_19, %c0_20] : memref<9x8x8xbf16, #tpu.memory_space<vmem>>, vector<1x8x8xbf16>
    %31 = vector.shape_cast %30 : vector<1x8x8xbf16> to vector<8x8xbf16>
    %cst_21 = arith.constant dense<0.000000e+00> : vector<8x1024xf32>
    %32 = tpu.matmul %31, %29, %cst_21 {dimension_numbers = #tpu.dot_dimension_numbers<[1], [0], [0], [1], [0, 0, 1, 1], [], []>} : vector<8x8xbf16>, vector<8x1024xbf16>, vector<8x1024xf32> -> vector<8x1024xf32>
    %33 = arith.addf %28, %32 : vector<8x1024xf32>
    %34 = vector.extract_strided_slice %23 {offsets = [0, 128], sizes = [8, 1024], strides = [1, 1]} : vector<8x1152xbf16> to vector<8x1024xbf16>
    %c5 = arith.constant 5 : index
    %c0_22 = arith.constant 0 : index
    %c0_23 = arith.constant 0 : index
    %35 = vector.load %arg4[%c5, %c0_22, %c0_23] : memref<9x8x8xbf16, #tpu.memory_space<vmem>>, vector<1x8x8xbf16>
    %36 = vector.shape_cast %35 : vector<1x8x8xbf16> to vector<8x8xbf16>
    %cst_24 = arith.constant dense<0.000000e+00> : vector<8x1024xf32>
    %37 = tpu.matmul %36, %34, %cst_24 {dimension_numbers = #tpu.dot_dimension_numbers<[1], [0], [0], [1], [0, 0, 1, 1], [], []>} : vector<8x8xbf16>, vector<8x1024xbf16>, vector<8x1024xf32> -> vector<8x1024xf32>
    %38 = arith.addf %33, %37 : vector<8x1024xf32>
    %39 = vector.extract_strided_slice %4 {offsets = [0, 2], sizes = [8, 1150], strides = [1, 1]} : vector<8x1152xbf16> to vector<8x1150xbf16>
    %cst_25 = arith.constant 0.000000e+00 : bf16
    %40 = vector.broadcast %cst_25 : bf16 to vector<8x2xbf16>
    %41 = tpu.concatenate %39, %40 in 1 : vector<8x1150xbf16>, vector<8x2xbf16> -> vector<8x1152xbf16>
    %42 = vector.extract_strided_slice %41 {offsets = [0, 0], sizes = [8, 1024], strides = [1, 1]} : vector<8x1152xbf16> to vector<8x1024xbf16>
    %c6 = arith.constant 6 : index
    %c0_26 = arith.constant 0 : index
    %c0_27 = arith.constant 0 : index
    %43 = vector.load %arg4[%c6, %c0_26, %c0_27] : memref<9x8x8xbf16, #tpu.memory_space<vmem>>, vector<1x8x8xbf16>
    %44 = vector.shape_cast %43 : vector<1x8x8xbf16> to vector<8x8xbf16>
    %cst_28 = arith.constant dense<0.000000e+00> : vector<8x1024xf32>
    %45 = tpu.matmul %44, %42, %cst_28 {dimension_numbers = #tpu.dot_dimension_numbers<[1], [0], [0], [1], [0, 0, 1, 1], [], []>} : vector<8x8xbf16>, vector<8x1024xbf16>, vector<8x1024xf32> -> vector<8x1024xf32>
    %46 = arith.addf %38, %45 : vector<8x1024xf32>
    %47 = vector.extract_strided_slice %41 {offsets = [0, 64], sizes = [8, 1024], strides = [1, 1]} : vector<8x1152xbf16> to vector<8x1024xbf16>
    %c7 = arith.constant 7 : index
    %c0_29 = arith.constant 0 : index
    %c0_30 = arith.constant 0 : index
    %48 = vector.load %arg4[%c7, %c0_29, %c0_30] : memref<9x8x8xbf16, #tpu.memory_space<vmem>>, vector<1x8x8xbf16>
    %49 = vector.shape_cast %48 : vector<1x8x8xbf16> to vector<8x8xbf16>
    %cst_31 = arith.constant dense<0.000000e+00> : vector<8x1024xf32>
    %50 = tpu.matmul %49, %47, %cst_31 {dimension_numbers = #tpu.dot_dimension_numbers<[1], [0], [0], [1], [0, 0, 1, 1], [], []>} : vector<8x8xbf16>, vector<8x1024xbf16>, vector<8x1024xf32> -> vector<8x1024xf32>
    %51 = arith.addf %46, %50 : vector<8x1024xf32>
    %52 = vector.extract_strided_slice %41 {offsets = [0, 128], sizes = [8, 1024], strides = [1, 1]} : vector<8x1152xbf16> to vector<8x1024xbf16>
    %c8 = arith.constant 8 : index
    %c0_32 = arith.constant 0 : index
    %c0_33 = arith.constant 0 : index
    %53 = vector.load %arg4[%c8, %c0_32, %c0_33] : memref<9x8x8xbf16, #tpu.memory_space<vmem>>, vector<1x8x8xbf16>
    %54 = vector.shape_cast %53 : vector<1x8x8xbf16> to vector<8x8xbf16>
    %cst_34 = arith.constant dense<0.000000e+00> : vector<8x1024xf32>
    %55 = tpu.matmul %54, %52, %cst_34 {dimension_numbers = #tpu.dot_dimension_numbers<[1], [0], [0], [1], [0, 0, 1, 1], [], []>} : vector<8x8xbf16>, vector<8x1024xbf16>, vector<8x1024xf32> -> vector<8x1024xf32>
    %56 = arith.addf %51, %55 : vector<8x1024xf32>
    %c0_35 = arith.constant 0 : index
    %c0_36 = arith.constant 0 : index
    %57 = vector.load %arg5[%c0_35, %c0_36] : memref<8x1xf32, #tpu.memory_space<vmem>>, vector<8x1xf32>
    %58 = vector.broadcast %57 : vector<8x1xf32> to vector<8x1024xf32>
    %59 = arith.addf %56, %58 : vector<8x1024xf32>
    %c0_37 = arith.constant 0 : index
    %c0_38 = arith.constant 0 : index
    %c0_39 = arith.constant 0 : index
    %60 = vector.load %arg6[%c0_37, %c0_38, %c0_39] : memref<1x8x1024xf32, #tpu.memory_space<vmem>>, vector<1x8x1024xf32>
    %61 = vector.shape_cast %60 : vector<1x8x1024xf32> to vector<8x1024xf32>
    %62 = vector.shape_cast %59 : vector<8x1024xf32> to vector<1x8x1024xf32>
    tpu.vector_store %arg6[%c0_37, %c0_38, %c0_39], %62 {strides = array<i32>} : memref<1x8x1024xf32, #tpu.memory_space<vmem>>, vector<1x8x1024xf32>,
    return
  }
  func.func @transform_0(%arg0: i32, %arg1: i32) -> (i32, i32, i32) {
    %c0_i32 = arith.constant 0 : i32
    %c0_i32_0 = arith.constant 0 : i32
    return %arg0, %c0_i32, %arg1 : i32, i32, i32
  }
  func.func @transform_1(%arg0: i32, %arg1: i32) -> (i32, i32, i32) {
    %c1_i32 = arith.constant 1 : i32
    %0 = arith.addi %arg1, %c1_i32 : i32
    %c8_i32 = arith.constant 8 : i32
    %1 = arith.muli %0, %c8_i32 : i32
    %c0_i32 = arith.constant 0 : i32
    %c0_i32_0 = arith.constant 0 : i32
    return %arg0, %c0_i32, %1 : i32, i32, i32
  }
  func.func @transform_2(%arg0: i32, %arg1: i32) -> (i32, i32, i32) {
    %c0_i32 = arith.constant 0 : i32
    %c0_i32_0 = arith.constant 0 : i32
    %c0_i32_1 = arith.constant 0 : i32
    %c0_i32_2 = arith.constant 0 : i32
    return %c0_i32, %c0_i32_0, %c0_i32_1 : i32, i32, i32
  }
  func.func @transform_3(%arg0: i32, %arg1: i32) -> (i32, i32) {
    %c0_i32 = arith.constant 0 : i32
    %c0_i32_0 = arith.constant 0 : i32
    %c0_i32_1 = arith.constant 0 : i32
    return %c0_i32, %c0_i32_0 : i32, i32
  }
  func.func @transform_4(%arg0: i32, %arg1: i32) -> (i32, i32, i32) {
    %c0_i32 = arith.constant 0 : i32
    %c0_i32_0 = arith.constant 0 : i32
    return %arg0, %c0_i32, %arg1 : i32, i32, i32
  }
}

</mosaic_0001>

<llo_original>
// kernel: meta_conv2d.1
$region0: #{meta_conv2d.1}
  #allocation0 [shape = 'u32[]', space=smem, size = 0x4, offset = 0x4, fixed_abs, tag = 'smem constant byte address 0x4 - core index']
  #allocation1 [shape = 'u32[144,128]{1,0:T(1,128)}', space=vmem, size = 0x12000, scoped, tag = 'internal scratch']
  %s0 = inlined_call_operand.vmem [shape: bf16[2,8,1152], index: 0, kind: input, shape index: {}, may-alias: {0,1}]
  %s1 = inlined_call_operand.vmem [shape: bf16[2,8,1152], index: 1, kind: input, shape index: {}, may-alias: {0,1}]
  %s2 = inlined_call_operand.vmem [shape: bf16[9,8,8], index: 2, kind: input, shape index: {}]
  %s3 = inlined_call_operand.vmem [shape: f32[8,1], index: 3, kind: input, shape index: {}]
  %s4 = inlined_call_operand.vmem [shape: f32[2,8,1024], index: 4, kind: output, shape index: {}]
  %s5 = sld [smem:[#allocation0]]
  $region49: #{meta_conv2d.1} parent=0
    _
  %s7 = ssub.s32 1, %s5
  %s8 = scalar_select 0, %s7, %s5
  loop: start=0, step=1, limit=4
  $region2: #{meta_conv2d.1} parent=0 // loop_pre_header
    _
  $region3: #{meta_conv2d.1} parent=0 // loop_header
    %s10 = sphi 0, %s14
    %p11 = scmp.ge.s32.totalorder %s10, 4
    %s17 = sphi 0, %s29
    %s18 = sphi 0, %s25
    %s19 = sphi 0, %s17
    %s20 = sphi 0, %s18
    %s21 = sphi 0, %s19
    %s22 = sphi 0, %s20
    %s34 = sphi 0, %s36
    %s37 = sphi 0, %s34
    %s38 = sphi 0, %s37
    %s54 = sphi 0, %s38
    %s66 = sphi 0, %s68
    %s69 = sphi 0, %s66
    %s70 = sphi 0, %s69
    %s86 = sphi 0, %s70
    %s90 = sphi 0, %s90
    %s92 = sphi 0, %s90
    %s93 = sphi 0, %s92
    %s107 = sphi 0, %s93
    %s111 = sphi 0, %s111
    %s113 = sphi 0, %s111
    %s114 = sphi 0, %s113
    %s128 = sphi 0, %s114
    %s136 = sphi 0, %s138
    %s139 = sphi 0, %s136
    %s140 = sphi 0, %s139
    %s156 = sphi 0, %s140
  $region4: #{meta_conv2d.1} parent=0 // loop_header_branch
    %13 = sbr.rel (%p11) target = $region8
  $region5: #{meta_conv2d.1} parent=0 // loop_body
    %s15 = ssub.s32 %s10, 1
    %s16 = ssub.s32 %s10, 2
    %s23 = sadd.s32 1, %s18
    %p24 = scmp.ge.s32.totalorder %s23, 1
    %s25 = scalar_select %p24, 0, %s23
    %s26 = sadd.s32 1, %s17
    %s27 = scalar_select %p24, %s26, %s17
    %p28 = scmp.ge.s32.totalorder %s27, 2
    %s29 = scalar_select %p28, 0, %s27
    %s30 = ssub.s32 %s17, %s29
    %s31 = ssub.s32 %s18, %s25
    %s32 = sor.u32 %s30, %s31
    %p33 = scmp.eq.s32.totalorder %s32, 0
    %s35 = sadd.s32 %s34, 1
    %s36 = scalar_select %p33, %s34, %s35
    %p39 = pneg %p33
    %p40 = scmp.eq.s32.totalorder %s10, 1
    %p41 = por %p39, %p40
    %p42 = scmp.ne.s32.totalorder %s34, %s37
    %p43 = scmp.eq.s32.totalorder %s10, 0
    %p44 = por %p42, %p43
    %p45 = scmp.ne.s32.totalorder %s34, %s37
    %p46 = scmp.eq.s32.totalorder %s15, 1
    %p47 = por %p45, %p46
    %p48 = scmp.ne.s32.totalorder %s37, %s38
    %p49 = scmp.eq.s32.totalorder %s15, 0
    %p50 = por %p48, %p49
    %p51 = scmp.ne.s32.totalorder %s37, %s38
    %p52 = scmp.eq.s32.totalorder %s16, 1
    %p53 = por %p51, %p52
    %p55 = scmp.ne.s32.totalorder %s38, %s54
    %p56 = scmp.eq.s32.totalorder %s16, 0
    %p57 = por %p55, %p56
    %s58 = sadd.s32 %s18, 1
    %s59 = smul.u32 %s58, 8
    %s60 = sadd.s32 %s25, 1
    %s61 = smul.u32 %s60, 8
    %s62 = ssub.s32 %s17, %s29
    %s63 = ssub.s32 %s59, %s61
    %s64 = sor.u32 %s62, %s63
    %p65 = scmp.eq.s32.totalorder %s64, 0
    %s67 = sadd.s32 %s66, 1
    %s68 = scalar_select %p65, %s66, %s67
    %p71 = pneg %p65
    %p72 = scmp.eq.s32.totalorder %s10, 1
    %p73 = por %p71, %p72
    %p74 = scmp.ne.s32.totalorder %s66, %s69
    %p75 = scmp.eq.s32.totalorder %s10, 0
    %p76 = por %p74, %p75
    %p77 = scmp.ne.s32.totalorder %s66, %s69
    %p78 = scmp.eq.s32.totalorder %s15, 1
    %p79 = por %p77, %p78
    %p80 = scmp.ne.s32.totalorder %s69, %s70
    %p81 = scmp.eq.s32.totalorder %s15, 0
    %p82 = por %p80, %p81
    %p83 = scmp.ne.s32.totalorder %s69, %s70
    %p84 = scmp.eq.s32.totalorder %s16, 1
    %p85 = por %p83, %p84
    %p87 = scmp.ne.s32.totalorder %s70, %s86
    %p88 = scmp.eq.s32.totalorder %s16, 0
    %p89 = por %p87, %p88
    %s91 = sadd.s32 %s90, 1
    %p94 = scmp.eq.s32.totalorder %s10, 1
    %p95 = scmp.ne.s32.totalorder %s90, %s92
    %p96 = scmp.eq.s32.totalorder %s10, 0
    %p97 = por %p95, %p96
    %p98 = scmp.ne.s32.totalorder %s90, %s92
    %p99 = scmp.eq.s32.totalorder %s15, 1
    %p100 = por %p98, %p99
    %p101 = scmp.ne.s32.totalorder %s92, %s93
    %p102 = scmp.eq.s32.totalorder %s15, 0
    %p103 = por %p101, %p102
    %p104 = scmp.ne.s32.totalorder %s92, %s93
    %p105 = scmp.eq.s32.totalorder %s16, 1
    %p106 = por %p104, %p105
    %p108 = scmp.ne.s32.totalorder %s93, %s107
    %p109 = scmp.eq.s32.totalorder %s16, 0
    %p110 = por %p108, %p109
    %s112 = sadd.s32 %s111, 1
    %p115 = scmp.eq.s32.totalorder %s10, 1
    %p116 = scmp.ne.s32.totalorder %s111, %s113
    %p117 = scmp.eq.s32.totalorder %s10, 0
    %p118 = por %p116, %p117
    %p119 = scmp.ne.s32.totalorder %s111, %s113
    %p120 = scmp.eq.s32.totalorder %s15, 1
    %p121 = por %p119, %p120
    %p122 = scmp.ne.s32.totalorder %s113, %s114
    %p123 = scmp.eq.s32.totalorder %s15, 0
    %p124 = por %p122, %p123
    %p125 = scmp.ne.s32.totalorder %s113, %s114
    %p126 = scmp.eq.s32.totalorder %s16, 1
    %p127 = por %p125, %p126
    %p129 = scmp.ne.s32.totalorder %s114, %s128
    %p130 = scmp.eq.s32.totalorder %s16, 0
    %p131 = por %p129, %p130
    %s132 = ssub.s32 %s17, %s29
    %s133 = ssub.s32 %s18, %s25
    %s134 = sor.u32 %s132, %s133
    %p135 = scmp.eq.s32.totalorder %s134, 0
    %s137 = sadd.s32 %s136, 1
    %s138 = scalar_select %p135, %s136, %s137
    %p141 = pneg %p135
    %p142 = scmp.eq.s32.totalorder %s10, 1
    %p143 = por %p141, %p142
    %p144 = scmp.ne.s32.totalorder %s136, %s139
    %p145 = scmp.eq.s32.totalorder %s10, 0
    %p146 = por %p144, %p145
    %p147 = scmp.ne.s32.totalorder %s136, %s139
    %p148 = scmp.eq.s32.totalorder %s15, 1
    %p149 = por %p147, %p148
    %p150 = scmp.ne.s32.totalorder %s139, %s140
    %p151 = scmp.eq.s32.totalorder %s15, 0
    %p152 = por %p150, %p151
    %p153 = scmp.ne.s32.totalorder %s139, %s140
    %p154 = scmp.eq.s32.totalorder %s16, 1
    %p155 = por %p153, %p154
    %p157 = scmp.ne.s32.totalorder %s140, %s156
    %p158 = scmp.eq.s32.totalorder %s16, 0
    %p159 = por %p157, %p158
    %p160 = scmp.le.s32.totalorder 1, %s10
    %p161 = scmp.lt.s32.totalorder %s10, 3
    %p162 = pnand %p160, %p161
    %p163 = pneg %p162
    // Predicated region
    $region9: #{meta_conv2d.1} parent=5 // pred_check
      _
    $region10: #{meta_conv2d.1} parent=5 // pred_check_branch
      %165 = sbr.rel (%p162) target = $region12
    $region11: #{meta_conv2d.1} parent=5 // pred_region
      %s166 = ssub.s32 %s10, 1
      // Predicated region
      $region13: #{meta_conv2d.1} parent=11 // pred_check
        %p167 = pneg %p103
      $region14: #{meta_conv2d.1} parent=11 // pred_check_branch
        %169 = sbr.rel (%p167) target = $region16
      $region15: #{meta_conv2d.1} parent=11 // pred_region
        _
      $region16: #{meta_conv2d.1} parent=11 // pred_fallthru
        _
      // Predicated region
      $region17: #{meta_conv2d.1} parent=11 // pred_check
        %p170 = pneg %p124
      $region18: #{meta_conv2d.1} parent=11 // pred_check_branch
        %172 = sbr.rel (%p170) target = $region20
      $region19: #{meta_conv2d.1} parent=11 // pred_region
        _
      $region20: #{meta_conv2d.1} parent=11 // pred_fallthru
        _
    $region12: #{meta_conv2d.1} parent=5 // pred_fallthru
      _
    %p173 = scmp.lt.s32.totalorder %s10, 2
    // Predicated region
    $region21: #{meta_conv2d.1} parent=5 // pred_check
      %p174 = pneg %p173
    $region22: #{meta_conv2d.1} parent=5 // pred_check_branch
      %176 = sbr.rel (%p174) target = $region24
    $region23: #{meta_conv2d.1} parent=5 // pred_region
      // Predicated region
      $region25: #{meta_conv2d.1} parent=23 // pred_check
        %p177 = pneg %p44
      $region26: #{meta_conv2d.1} parent=23 // pred_check_branch
        %179 = sbr.rel (%p177) target = $region28
      $region27: #{meta_conv2d.1} parent=23 // pred_region
        %s180 = smul.u32 8, %s18
        %s181 = ssub.s32 9, %s180
        %p182 = scmp.lt.s32.totalorder %s181, 8
        %s183 = scalar_select %p182, %s181, 8
        %s184 = smul.u32 64, %s183
        %p185 = scmp.lt.s32.totalorder %s17, 1
        %s186 = scalar_select %p185, %s17, 1
        %p187 = scmp.lt.s32.totalorder %s180, 8
        %s188 = scalar_select %p187, %s180, 8
        %s189 = smul.addr %s186, 9
        %s190 = sadd.s32 %s188, %s189
        %s191 = smul.addr %s190, 4
        %s192 = scalar_lea.vmem %s0, %s191
        %s193 = smul.u32 8, %s18
        %s194 = ssub.s32 9, %s193
        %p195 = scmp.lt.s32.totalorder %s194, 8
        %s196 = scalar_select %p195, %s194, 8
        %s197 = smul.u32 64, %s196
      $region28: #{meta_conv2d.1} parent=23 // pred_fallthru
        _
      // Predicated region
      $region29: #{meta_conv2d.1} parent=23 // pred_check
        %p198 = pneg %p76
      $region30: #{meta_conv2d.1} parent=23 // pred_check_branch
        %200 = sbr.rel (%p198) target = $region32
      $region31: #{meta_conv2d.1} parent=23 // pred_region
        %s201 = sadd.s32 %s18, 1
        %s202 = smul.u32 %s201, 8
        %p203 = scmp.lt.s32.totalorder %s17, 1
        %s204 = scalar_select %p203, %s17, 1
        %p205 = scmp.lt.s32.totalorder %s202, 8
        %s206 = scalar_select %p205, %s202, 8
        %s207 = smul.addr %s204, 9
        %s208 = sadd.s32 %s206, %s207
        %s209 = smul.addr %s208, 4
        %s210 = scalar_lea.vmem %s1, %s209
        %s211 = sadd.s32 %s18, 1
        %s212 = smul.u32 %s211, 8
      $region32: #{meta_conv2d.1} parent=23 // pred_fallthru
        _
    $region24: #{meta_conv2d.1} parent=5 // pred_fallthru
      _
    %p213 = scmp.le.s32.totalorder 1, %s10
    %p214 = scmp.lt.s32.totalorder %s10, 3
    %p215 = pnand %p213, %p214
    %p216 = pneg %p215
    // Predicated region
    $region33: #{meta_conv2d.1} parent=5 // pred_check
      _
    $region34: #{meta_conv2d.1} parent=5 // pred_check_branch
      %218 = sbr.rel (%p215) target = $region36
    $region35: #{meta_conv2d.1} parent=5 // pred_region
      %s219 = ssub.s32 %s10, 1
      %s220 = smul.u32 8, %s20
      %s221 = ssub.s32 9, %s220
      %p222 = scmp.lt.s32.totalorder %s221, 8
      %s223 = scalar_select %p222, %s221, 8
      %s224 = smul.u32 64, %s223
      %p225 = scmp.lt.s32.totalorder %s19, 1
      %s226 = scalar_select %p225, %s19, 1
      %p227 = scmp.lt.s32.totalorder %s220, 8
      %s228 = scalar_select %p227, %s220, 8
      %s229 = smul.addr %s226, 9
      %s230 = sadd.s32 %s228, %s229
      %s231 = smul.addr %s230, 4
      %s232 = scalar_lea.vmem %s0, %s231
      %p233 = pneg %p50
      %p234 = pneg %p47
      %s235 = sadd.s32 %s20, 1
      %s236 = smul.u32 %s235, 8
      %p237 = scmp.lt.s32.totalorder %s19, 1
      %s238 = scalar_select %p237, %s19, 1
      %p239 = scmp.lt.s32.totalorder %s236, 8
      %s240 = scalar_select %p239, %s236, 8
      %s241 = smul.addr %s238, 9
      %s242 = sadd.s32 %s240, %s241
      %s243 = smul.addr %s242, 4
      %s244 = scalar_lea.vmem %s1, %s243
      %p245 = pneg %p82
      %p246 = pneg %p79
      %p247 = pneg %p103
      %p248 = pneg %p100
      %p249 = pneg %p124
      %p250 = pneg %p121
      %p251 = pneg %p152
      %p252 = pneg %p149
      %s253 = smul.u32 8, %s20
      %p254 = scmp.lt.s32.totalorder %s19, 1
      %s255 = scalar_select %p254, %s19, 1
      %p256 = scmp.lt.s32.totalorder %s253, 7
      %s257 = scalar_select %p256, %s253, 7
      %s258 = smul.addr %s255, 8
      %s259 = sadd.s32 %s257, %s258
      %s260 = smul.addr %s259, 8
      %s261 = scalar_lea.vmem %s4, %s260
      %s262 = smul.u32 8, %s20
      %s263 = ssub.s32 9, %s262
      %p264 = scmp.lt.s32.totalorder %s263, 8
      %s265 = scalar_select %p264, %s263, 8
      %s266 = smul.u32 64, %s265
      %p267 = scmp.lt.s32.totalorder %s19, 1
      %s268 = scalar_select %p267, %s19, 1
      %p269 = scmp.lt.s32.totalorder %s262, 8
      %s270 = scalar_select %p269, %s262, 8
      %s271 = smul.addr %s268, 9
      %s272 = sadd.s32 %s270, %s271
      %s273 = smul.addr %s272, 4
      %s274 = scalar_lea.vmem %s0, %s273
      %s275 = smul.u32 8, %s20
      %s276 = ssub.s32 9, %s275
      %p277 = scmp.lt.s32.totalorder %s276, 8
      %s278 = scalar_select %p277, %s276, 8
      %s279 = smul.u32 64, %s278
      %s280 = sadd.s32 %s20, 1
      %s281 = smul.u32 %s280, 8
      %p282 = scmp.lt.s32.totalorder %s19, 1
      %s283 = scalar_select %p282, %s19, 1
      %p284 = scmp.lt.s32.totalorder %s281, 8
      %s285 = scalar_select %p284, %s281, 8
      %s286 = smul.addr %s283, 9
      %s287 = sadd.s32 %s285, %s286
      %s288 = smul.addr %s287, 4
      %s289 = scalar_lea.vmem %s1, %s288
      %s290 = sadd.s32 %s20, 1
      %s291 = smul.u32 %s290, 8
      %s292 = smul.u32 8, %s20
      %p293 = scmp.lt.s32.totalorder %s19, 1
      %s294 = scalar_select %p293, %s19, 1
      %p295 = scmp.lt.s32.totalorder %s292, 7
      %s296 = scalar_select %p295, %s292, 7
      %s297 = smul.addr %s294, 8
      %s298 = sadd.s32 %s296, %s297
      %s299 = smul.addr %s298, 8
      %s300 = scalar_lea.vmem %s4, %s299
      %s301 = smul.u32 8, %s20
      %v303 = vld [vmem:[%s274] sm:$0xff]
      %v304 = vld [vmem:[%s274 + $0x8] sm:$0xff]
      %v305 = vld [vmem:[%s274 + $0x10] sm:$0xff]
      %v306 = vld [vmem:[%s274 + $0x18] sm:$0xff]
      %v307 = vld [vmem:[%s289] sm:$0xf]
      %v312 = vunpack.c.l.b16 %v303
      %v313 = vunpack.c.h.b16 %v303
      %v314 = vunpack.c.l.b16 %v304
      %v315 = vunpack.c.h.b16 %v304
      %v316 = vunpack.c.l.b16 %v305
      %v317 = vunpack.c.h.b16 %v305
      %v318 = vunpack.c.l.b16 %v306
      %v319 = vunpack.c.h.b16 %v306
      %v320 = vpack.c.b16 %v312, %v312
      %v321 = vpack.c.b16 %v313, %v313
      %v322 = vpack.c.b16 %v314, %v314
      %v323 = vpack.c.b16 %v315, %v315
      %v324 = vpack.c.b16 %v316, %v316
      %v325 = vpack.c.b16 %v317, %v317
      %v326 = vpack.c.b16 %v318, %v318
      %v327 = vpack.c.b16 %v319, %v319
      %v328 = vld [vmem:[%s2] sm:$0xf]
      %s329 = scalar_lea.vmem %s2, 4
      %v330 = vld [vmem:[%s329] sm:$0xf]
      %332 = vrot.lane.b32.xlu0 %v320, 64
      %v333 = vpop.permute.xlu0 %332
      %334 = vrot.lane.b32.xlu0 %v321, 64
      %v335 = vpop.permute.xlu0 %334
      %336 = vrot.lane.b32.xlu0 %v322, 64
      %v337 = vpop.permute.xlu0 %336
      %338 = vrot.lane.b32.xlu0 %v323, 64
      %v339 = vpop.permute.xlu0 %338
      %340 = vrot.lane.b32.xlu0 %v324, 64
      %v341 = vpop.permute.xlu0 %340
      %342 = vrot.lane.b32.xlu0 %v325, 64
      %v343 = vpop.permute.xlu0 %342
      %344 = vrot.lane.b32.xlu0 %v326, 64
      %v345 = vpop.permute.xlu0 %344
      %346 = vrot.lane.b32.xlu0 %v327, 64
      %v347 = vpop.permute.xlu0 %346
      %348 = vrot.lane.b32.xlu0 %v307, 64
      %v349 = vpop.permute.xlu0 %348
      %vm350 = vcmask 523264
      %v351 = vsel %vm350, %v333, %v335
      %v352 = vsel %vm350, %v335, %v337
      %v353 = vsel %vm350, %v337, %v339
      %v354 = vsel %vm350, %v339, %v341
      %v355 = vsel %vm350, %v341, %v343
      %v356 = vsel %vm350, %v343, %v345
      %v357 = vsel %vm350, %v345, %v347
      %v358 = vsel %vm350, %v347, %v349
      %vm359 = vcmask 64512
      %v361 = vsel %vm359, %v330, 0
      %vm363 = vcmask 1043456
      %v365 = vsel %vm363, %v351, 0
      %v368 = vsel %vm363, %v352, 0
      %v371 = vsel %vm363, %v353, 0
      %v374 = vsel %vm363, %v354, 0
      %v377 = vsel %vm363, %v355, 0
      %v380 = vsel %vm363, %v356, 0
      %v383 = vsel %vm363, %v357, 0
      %v386 = vsel %vm363, %v358, 0
      %388 = vmatprep.subr.bf16.mxu0 0
      %389 = vmatpush1.bf16.msra.mxu0 0
      %390 = vmatprep.subr.bf16.mxu0 0
      %391 = vmatpush1.bf16.msra.mxu0 0
      %392 = vmatprep.subr.bf16.mxu0 0
      %393 = vmatpush1.bf16.msra.mxu0 0
      %394 = vmatprep.subr.bf16.mxu0 0
      %395 = vmatpush1.bf16.msra.mxu0 0
      %396 = vmatprep.subr.bf16.mxu0 0
      %397 = vmatpush1.bf16.msra.mxu0 0
      %398 = vmatprep.subr.bf16.mxu0 0
      %399 = vmatpush1.bf16.msra.mxu0 0
      %400 = vmatprep.subr.bf16.mxu0 0
      %401 = vmatpush1.bf16.msra.mxu0 0
      %402 = vmatprep.subr.bf16.mxu0 %v368
      %403 = vmatpush1.bf16.msra.mxu0 %v365
      %404 = vmatprep.subr.bf16.mxu0 0
      %405 = vmatpush2.bf16.msra.mxu0 0
      %406 = vmatprep.subr.bf16.mxu0 0
      %407 = vmatpush2.bf16.msra.mxu0 0
      %408 = vmatprep.subr.bf16.mxu0 0
      %409 = vmatpush2.bf16.msra.mxu0 0
      %410 = vmatprep.subr.bf16.mxu0 0
      %411 = vmatpush2.bf16.msra.mxu0 0
      %412 = vmatprep.subr.bf16.mxu0 0
      %413 = vmatpush2.bf16.msra.mxu0 0
      %414 = vmatprep.subr.bf16.mxu0 0
      %415 = vmatpush2.bf16.msra.mxu0 0
      %416 = vmatprep.subr.bf16.mxu0 0
      %417 = vmatpush2.bf16.msra.mxu0 0
      %418 = vmatprep.subr.bf16.mxu0 0
      %419 = vmatpush2.bf16.msra.mxu0 0
      %420 = vmatprep.mubr.bf16.mxu0 0
      %421 = vmatmul.mubr.bf16.gmra.mxu0 %v361
      %v422 = vpop.f32.mrf.mxu0
      %v423 = vadd.f32 0.0, %v422
      %v424 = vpop.f32.mrf.mxu0
      %v425 = vadd.f32 0.0, %v424
      %v426 = vpop.f32.mrf.mxu0
      %v427 = vpop.f32.mrf.mxu0
      %428 = vdwg.mxu0
      %429 = vmatprep.subr.bf16.mxu0 0
      %430 = vmatpush1.bf16.msra.mxu0 0
      %431 = vmatprep.subr.bf16.mxu0 0
      %432 = vmatpush1.bf16.msra.mxu0 0
      %433 = vmatprep.subr.bf16.mxu0 0
      %434 = vmatpush1.bf16.msra.mxu0 0
      %435 = vmatprep.subr.bf16.mxu0 0
      %436 = vmatpush1.bf16.msra.mxu0 0
      %437 = vmatprep.subr.bf16.mxu0 0
      %438 = vmatpush1.bf16.msra.mxu0 0
      %439 = vmatprep.subr.bf16.mxu0 0
      %440 = vmatpush1.bf16.msra.mxu0 0
      %441 = vmatprep.subr.bf16.mxu0 0
      %442 = vmatpush1.bf16.msra.mxu0 0
      %443 = vmatprep.subr.bf16.mxu0 %v374
      %444 = vmatpush1.bf16.msra.mxu0 %v371
      %445 = vmatprep.subr.bf16.mxu0 0
      %446 = vmatpush2.bf16.msra.mxu0 0
      %447 = vmatprep.subr.bf16.mxu0 0
      %448 = vmatpush2.bf16.msra.mxu0 0
      %449 = vmatprep.subr.bf16.mxu0 0
      %450 = vmatpush2.bf16.msra.mxu0 0
      %451 = vmatprep.subr.bf16.mxu0 0
      %452 = vmatpush2.bf16.msra.mxu0 0
      %453 = vmatprep.subr.bf16.mxu0 0
      %454 = vmatpush2.bf16.msra.mxu0 0
      %455 = vmatprep.subr.bf16.mxu0 0
      %456 = vmatpush2.bf16.msra.mxu0 0
      %457 = vmatprep.subr.bf16.mxu0 0
      %458 = vmatpush2.bf16.msra.mxu0 0
      %459 = vmatprep.subr.bf16.mxu0 0
      %460 = vmatpush2.bf16.msra.mxu0 0
      %461 = vmatprep.mubr.bf16.mxu0 0
      %462 = vmatmul.mubr.bf16.gmra.mxu0 %v361
      %v463 = vpop.f32.mrf.mxu0
      %v464 = vadd.f32 0.0, %v463
      %v465 = vpop.f32.mrf.mxu0
      %v466 = vadd.f32 0.0, %v465
      %v467 = vpop.f32.mrf.mxu0
      %v468 = vpop.f32.mrf.mxu0
      %469 = vdwg.mxu0
      %470 = vmatprep.subr.bf16.mxu0 0
      %471 = vmatpush1.bf16.msra.mxu0 0
      %472 = vmatprep.subr.bf16.mxu0 0
      %473 = vmatpush1.bf16.msra.mxu0 0
      %474 = vmatprep.subr.bf16.mxu0 0
      %475 = vmatpush1.bf16.msra.mxu0 0
      %476 = vmatprep.subr.bf16.mxu0 0
      %477 = vmatpush1.bf16.msra.mxu0 0
      %478 = vmatprep.subr.bf16.mxu0 0
      %479 = vmatpush1.bf16.msra.mxu0 0
      %480 = vmatprep.subr.bf16.mxu0 0
      %481 = vmatpush1.bf16.msra.mxu0 0
      %482 = vmatprep.subr.bf16.mxu0 0
      %483 = vmatpush1.bf16.msra.mxu0 0
      %484 = vmatprep.subr.bf16.mxu0 %v380
      %485 = vmatpush1.bf16.msra.mxu0 %v377
      %486 = vmatprep.subr.bf16.mxu0 0
      %487 = vmatpush2.bf16.msra.mxu0 0
      %488 = vmatprep.subr.bf16.mxu0 0
      %489 = vmatpush2.bf16.msra.mxu0 0
      %490 = vmatprep.subr.bf16.mxu0 0
      %491 = vmatpush2.bf16.msra.mxu0 0
      %492 = vmatprep.subr.bf16.mxu0 0
      %493 = vmatpush2.bf16.msra.mxu0 0
      %494 = vmatprep.subr.bf16.mxu0 0
      %495 = vmatpush2.bf16.msra.mxu0 0
      %496 = vmatprep.subr.bf16.mxu0 0
      %497 = vmatpush2.bf16.msra.mxu0 0
      %498 = vmatprep.subr.bf16.mxu0 0
      %499 = vmatpush2.bf16.msra.mxu0 0
      %500 = vmatprep.subr.bf16.mxu0 0
      %501 = vmatpush2.bf16.msra.mxu0 0
      %502 = vmatprep.mubr.bf16.mxu0 0
      %503 = vmatmul.mubr.bf16.gmra.mxu0 %v361
      %v504 = vpop.f32.mrf.mxu0
      %v505 = vadd.f32 0.0, %v504
      %v506 = vpop.f32.mrf.mxu0
      %v507 = vadd.f32 0.0, %v506
      %v508 = vpop.f32.mrf.mxu0
      %v509 = vpop.f32.mrf.mxu0
      %510 = vdwg.mxu0
      %511 = vmatprep.subr.bf16.mxu0 0
      %512 = vmatpush1.bf16.msra.mxu0 0
      %513 = vmatprep.subr.bf16.mxu0 0
      %514 = vmatpush1.bf16.msra.mxu0 0
      %515 = vmatprep.subr.bf16.mxu0 0
      %516 = vmatpush1.bf16.msra.mxu0 0
      %517 = vmatprep.subr.bf16.mxu0 0
      %518 = vmatpush1.bf16.msra.mxu0 0
      %519 = vmatprep.subr.bf16.mxu0 0
      %520 = vmatpush1.bf16.msra.mxu0 0
      %521 = vmatprep.subr.bf16.mxu0 0
      %522 = vmatpush1.bf16.msra.mxu0 0
      %523 = vmatprep.subr.bf16.mxu0 0
      %524 = vmatpush1.bf16.msra.mxu0 0
      %525 = vmatprep.subr.bf16.mxu0 %v386
      %526 = vmatpush1.bf16.msra.mxu0 %v383
      %527 = vmatprep.subr.bf16.mxu0 0
      %528 = vmatpush2.bf16.msra.mxu0 0
      %529 = vmatprep.subr.bf16.mxu0 0
      %530 = vmatpush2.bf16.msra.mxu0 0
      %531 = vmatprep.subr.bf16.mxu0 0
      %532 = vmatpush2.bf16.msra.mxu0 0
      %533 = vmatprep.subr.bf16.mxu0 0
      %534 = vmatpush2.bf16.msra.mxu0 0
      %535 = vmatprep.subr.bf16.mxu0 0
      %536 = vmatpush2.bf16.msra.mxu0 0
      %537 = vmatprep.subr.bf16.mxu0 0
      %538 = vmatpush2.bf16.msra.mxu0 0
      %539 = vmatprep.subr.bf16.mxu0 0
      %540 = vmatpush2.bf16.msra.mxu0 0
      %541 = vmatprep.subr.bf16.mxu0 0
      %542 = vmatpush2.bf16.msra.mxu0 0
      %543 = vmatprep.mubr.bf16.mxu0 0
      %544 = vmatmul.mubr.bf16.gmra.mxu0 %v361
      %v545 = vpop.f32.mrf.mxu0
      %v546 = vadd.f32 0.0, %v545
      %v547 = vpop.f32.mrf.mxu0
      %v548 = vadd.f32 0.0, %v547
      %v549 = vpop.f32.mrf.mxu0
      %v550 = vpop.f32.mrf.mxu0
      %551 = vdwg.mxu0
      %v553 = vsel %vm359, %v328, 0
      %v556 = vsel %vm363, %v320, 0
      %v559 = vsel %vm363, %v321, 0
      %v562 = vsel %vm363, %v322, 0
      %v565 = vsel %vm363, %v323, 0
      %v568 = vsel %vm363, %v324, 0
      %v571 = vsel %vm363, %v325, 0
      %v574 = vsel %vm363, %v326, 0
      %v577 = vsel %vm363, %v327, 0
      %579 = vmatprep.subr.bf16.mxu0 0
      %580 = vmatpush1.bf16.msra.mxu0 0
      %581 = vmatprep.subr.bf16.mxu0 0
      %582 = vmatpush1.bf16.msra.mxu0 0
      %583 = vmatprep.subr.bf16.mxu0 0
      %584 = vmatpush1.bf16.msra.mxu0 0
      %585 = vmatprep.subr.bf16.mxu0 0
      %586 = vmatpush1.bf16.msra.mxu0 0
      %587 = vmatprep.subr.bf16.mxu0 0
      %588 = vmatpush1.bf16.msra.mxu0 0
      %589 = vmatprep.subr.bf16.mxu0 0
      %590 = vmatpush1.bf16.msra.mxu0 0
      %591 = vmatprep.subr.bf16.mxu0 0
      %592 = vmatpush1.bf16.msra.mxu0 0
      %593 = vmatprep.subr.bf16.mxu0 %v559
      %594 = vmatpush1.bf16.msra.mxu0 %v556
      %595 = vmatprep.subr.bf16.mxu0 0
      %596 = vmatpush2.bf16.msra.mxu0 0
      %597 = vmatprep.subr.bf16.mxu0 0
      %598 = vmatpush2.bf16.msra.mxu0 0
      %599 = vmatprep.subr.bf16.mxu0 0
      %600 = vmatpush2.bf16.msra.mxu0 0
      %601 = vmatprep.subr.bf16.mxu0 0
      %602 = vmatpush2.bf16.msra.mxu0 0
      %603 = vmatprep.subr.bf16.mxu0 0
      %604 = vmatpush2.bf16.msra.mxu0 0
      %605 = vmatprep.subr.bf16.mxu0 0
      %606 = vmatpush2.bf16.msra.mxu0 0
      %607 = vmatprep.subr.bf16.mxu0 0
      %608 = vmatpush2.bf16.msra.mxu0 0
      %609 = vmatprep.subr.bf16.mxu0 0
      %610 = vmatpush2.bf16.msra.mxu0 0
      %611 = vmatprep.mubr.bf16.mxu0 0
      %612 = vmatmul.mubr.bf16.gmra.mxu0 %v553
      %v613 = vpop.f32.mrf.mxu0
      %v614 = vadd.f32 %v423, %v613
      %v615 = vpop.f32.mrf.mxu0
      %v616 = vadd.f32 %v425, %v615
      %v617 = vpop.f32.mrf.mxu0
      %v618 = vpop.f32.mrf.mxu0
      %619 = vdwg.mxu0
      %620 = vmatprep.subr.bf16.mxu0 0
      %621 = vmatpush1.bf16.msra.mxu0 0
      %622 = vmatprep.subr.bf16.mxu0 0
      %623 = vmatpush1.bf16.msra.mxu0 0
      %624 = vmatprep.subr.bf16.mxu0 0
      %625 = vmatpush1.bf16.msra.mxu0 0
      %626 = vmatprep.subr.bf16.mxu0 0
      %627 = vmatpush1.bf16.msra.mxu0 0
      %628 = vmatprep.subr.bf16.mxu0 0
      %629 = vmatpush1.bf16.msra.mxu0 0
      %630 = vmatprep.subr.bf16.mxu0 0
      %631 = vmatpush1.bf16.msra.mxu0 0
      %632 = vmatprep.subr.bf16.mxu0 0
      %633 = vmatpush1.bf16.msra.mxu0 0
      %634 = vmatprep.subr.bf16.mxu0 %v565
      %635 = vmatpush1.bf16.msra.mxu0 %v562
      %636 = vmatprep.subr.bf16.mxu0 0
      %637 = vmatpush2.bf16.msra.mxu0 0
      %638 = vmatprep.subr.bf16.mxu0 0
      %639 = vmatpush2.bf16.msra.mxu0 0
      %640 = vmatprep.subr.bf16.mxu0 0
      %641 = vmatpush2.bf16.msra.mxu0 0
      %642 = vmatprep.subr.bf16.mxu0 0
      %643 = vmatpush2.bf16.msra.mxu0 0
      %644 = vmatprep.subr.bf16.mxu0 0
      %645 = vmatpush2.bf16.msra.mxu0 0
      %646 = vmatprep.subr.bf16.mxu0 0
      %647 = vmatpush2.bf16.msra.mxu0 0
      %648 = vmatprep.subr.bf16.mxu0 0
      %649 = vmatpush2.bf16.msra.mxu0 0
      %650 = vmatprep.subr.bf16.mxu0 0
      %651 = vmatpush2.bf16.msra.mxu0 0
      %652 = vmatprep.mubr.bf16.mxu0 0
      %653 = vmatmul.mubr.bf16.gmra.mxu0 %v553
      %v654 = vpop.f32.mrf.mxu0
      %v655 = vadd.f32 %v464, %v654
      %v656 = vpop.f32.mrf.mxu0
      %v657 = vadd.f32 %v466, %v656
      %v658 = vpop.f32.mrf.mxu0
      %v659 = vpop.f32.mrf.mxu0
      %660 = vdwg.mxu0
      %661 = vmatprep.subr.bf16.mxu0 0
      %662 = vmatpush1.bf16.msra.mxu0 0
      %663 = vmatprep.subr.bf16.mxu0 0
      %664 = vmatpush1.bf16.msra.mxu0 0
      %665 = vmatprep.subr.bf16.mxu0 0
      %666 = vmatpush1.bf16.msra.mxu0 0
      %667 = vmatprep.subr.bf16.mxu0 0
      %668 = vmatpush1.bf16.msra.mxu0 0
      %669 = vmatprep.subr.bf16.mxu0 0
      %670 = vmatpush1.bf16.msra.mxu0 0
      %671 = vmatprep.subr.bf16.mxu0 0
      %672 = vmatpush1.bf16.msra.mxu0 0
      %673 = vmatprep.subr.bf16.mxu0 0
      %674 = vmatpush1.bf16.msra.mxu0 0
      %675 = vmatprep.subr.bf16.mxu0 %v571
      %676 = vmatpush1.bf16.msra.mxu0 %v568
      %677 = vmatprep.subr.bf16.mxu0 0
      %678 = vmatpush2.bf16.msra.mxu0 0
      %679 = vmatprep.subr.bf16.mxu0 0
      %680 = vmatpush2.bf16.msra.mxu0 0
      %681 = vmatprep.subr.bf16.mxu0 0
      %682 = vmatpush2.bf16.msra.mxu0 0
      %683 = vmatprep.subr.bf16.mxu0 0
      %684 = vmatpush2.bf16.msra.mxu0 0
      %685 = vmatprep.subr.bf16.mxu0 0
      %686 = vmatpush2.bf16.msra.mxu0 0
      %687 = vmatprep.subr.bf16.mxu0 0
      %688 = vmatpush2.bf16.msra.mxu0 0
      %689 = vmatprep.subr.bf16.mxu0 0
      %690 = vmatpush2.bf16.msra.mxu0 0
      %691 = vmatprep.subr.bf16.mxu0 0
      %692 = vmatpush2.bf16.msra.mxu0 0
      %693 = vmatprep.mubr.bf16.mxu0 0
      %694 = vmatmul.mubr.bf16.gmra.mxu0 %v553
      %v695 = vpop.f32.mrf.mxu0
      %v696 = vadd.f32 %v505, %v695
      %v697 = vpop.f32.mrf.mxu0
      %v698 = vadd.f32 %v507, %v697
      %v699 = vpop.f32.mrf.mxu0
      %v700 = vpop.f32.mrf.mxu0
      %701 = vdwg.mxu0
      %702 = vmatprep.subr.bf16.mxu0 0
      %703 = vmatpush1.bf16.msra.mxu0 0
      %704 = vmatprep.subr.bf16.mxu0 0
      %705 = vmatpush1.bf16.msra.mxu0 0
      %706 = vmatprep.subr.bf16.mxu0 0
      %707 = vmatpush1.bf16.msra.mxu0 0
      %708 = vmatprep.subr.bf16.mxu0 0
      %709 = vmatpush1.bf16.msra.mxu0 0
      %710 = vmatprep.subr.bf16.mxu0 0
      %711 = vmatpush1.bf16.msra.mxu0 0
      %712 = vmatprep.subr.bf16.mxu0 0
      %713 = vmatpush1.bf16.msra.mxu0 0
      %714 = vmatprep.subr.bf16.mxu0 0
      %715 = vmatpush1.bf16.msra.mxu0 0
      %716 = vmatprep.subr.bf16.mxu0 %v577
      %717 = vmatpush1.bf16.msra.mxu0 %v574
      %718 = vmatprep.subr.bf16.mxu0 0
      %719 = vmatpush2.bf16.msra.mxu0 0
      %720 = vmatprep.subr.bf16.mxu0 0
      %721 = vmatpush2.bf16.msra.mxu0 0
      %722 = vmatprep.subr.bf16.mxu0 0
      %723 = vmatpush2.bf16.msra.mxu0 0
      %724 = vmatprep.subr.bf16.mxu0 0
      %725 = vmatpush2.bf16.msra.mxu0 0
      %726 = vmatprep.subr.bf16.mxu0 0
      %727 = vmatpush2.bf16.msra.mxu0 0
      %728 = vmatprep.subr.bf16.mxu0 0
      %729 = vmatpush2.bf16.msra.mxu0 0
      %730 = vmatprep.subr.bf16.mxu0 0
      %731 = vmatpush2.bf16.msra.mxu0 0
      %732 = vmatprep.subr.bf16.mxu0 0
      %733 = vmatpush2.bf16.msra.mxu0 0
      %734 = vmatprep.mubr.bf16.mxu0 0
      %735 = vmatmul.mubr.bf16.gmra.mxu0 %v553
      %v736 = vpop.f32.mrf.mxu0
      %v737 = vadd.f32 %v546, %v736
      %v738 = vpop.f32.mrf.mxu0
      %v739 = vadd.f32 %v548, %v738
      %v740 = vpop.f32.mrf.mxu0
      %v741 = vpop.f32.mrf.mxu0
      %742 = vdwg.mxu0
      %s743 = scalar_lea.vmem %s2, 8
      %v744 = vld [vmem:[%s743] sm:$0xf]
      %v746 = vsel %vm359, %v744, 0
      %v749 = vsel %vm363, %v307, 0
      %751 = vmatprep.subr.bf16.mxu0 0
      %752 = vmatpush1.bf16.msra.mxu0 0
      %753 = vmatprep.subr.bf16.mxu0 0
      %754 = vmatpush1.bf16.msra.mxu0 0
      %755 = vmatprep.subr.bf16.mxu0 0
      %756 = vmatpush1.bf16.msra.mxu0 0
      %757 = vmatprep.subr.bf16.mxu0 0
      %758 = vmatpush1.bf16.msra.mxu0 0
      %759 = vmatprep.subr.bf16.mxu0 0
      %760 = vmatpush1.bf16.msra.mxu0 0
      %761 = vmatprep.subr.bf16.mxu0 0
      %762 = vmatpush1.bf16.msra.mxu0 0
      %763 = vmatprep.subr.bf16.mxu0 0
      %764 = vmatpush1.bf16.msra.mxu0 0
      %765 = vmatprep.subr.bf16.mxu0 %v562
      %766 = vmatpush1.bf16.msra.mxu0 %v559
      %767 = vmatprep.subr.bf16.mxu0 0
      %768 = vmatpush2.bf16.msra.mxu0 0
      %769 = vmatprep.subr.bf16.mxu0 0
      %770 = vmatpush2.bf16.msra.mxu0 0
      %771 = vmatprep.subr.bf16.mxu0 0
      %772 = vmatpush2.bf16.msra.mxu0 0
      %773 = vmatprep.subr.bf16.mxu0 0
      %774 = vmatpush2.bf16.msra.mxu0 0
      %775 = vmatprep.subr.bf16.mxu0 0
      %776 = vmatpush2.bf16.msra.mxu0 0
      %777 = vmatprep.subr.bf16.mxu0 0
      %778 = vmatpush2.bf16.msra.mxu0 0
      %779 = vmatprep.subr.bf16.mxu0 0
      %780 = vmatpush2.bf16.msra.mxu0 0
      %781 = vmatprep.subr.bf16.mxu0 0
      %782 = vmatpush2.bf16.msra.mxu0 0
      %783 = vmatprep.mubr.bf16.mxu0 0
      %784 = vmatmul.mubr.bf16.gmra.mxu0 %v746
      %v785 = vpop.f32.mrf.mxu0
      %v786 = vadd.f32 0.0, %v785
      %v787 = vpop.f32.mrf.mxu0
      %v788 = vadd.f32 0.0, %v787
      %v789 = vpop.f32.mrf.mxu0
      %v790 = vpop.f32.mrf.mxu0
      %791 = vdwg.mxu0
      %792 = vmatprep.subr.bf16.mxu0 0
      %793 = vmatpush1.bf16.msra.mxu0 0
      %794 = vmatprep.subr.bf16.mxu0 0
      %795 = vmatpush1.bf16.msra.mxu0 0
      %796 = vmatprep.subr.bf16.mxu0 0
      %797 = vmatpush1.bf16.msra.mxu0 0
      %798 = vmatprep.subr.bf16.mxu0 0
      %799 = vmatpush1.bf16.msra.mxu0 0
      %800 = vmatprep.subr.bf16.mxu0 0
      %801 = vmatpush1.bf16.msra.mxu0 0
      %802 = vmatprep.subr.bf16.mxu0 0
      %803 = vmatpush1.bf16.msra.mxu0 0
      %804 = vmatprep.subr.bf16.mxu0 0
      %805 = vmatpush1.bf16.msra.mxu0 0
      %806 = vmatprep.subr.bf16.mxu0 %v568
      %807 = vmatpush1.bf16.msra.mxu0 %v565
      %808 = vmatprep.subr.bf16.mxu0 0
      %809 = vmatpush2.bf16.msra.mxu0 0
      %810 = vmatprep.subr.bf16.mxu0 0
      %811 = vmatpush2.bf16.msra.mxu0 0
      %812 = vmatprep.subr.bf16.mxu0 0
      %813 = vmatpush2.bf16.msra.mxu0 0
      %814 = vmatprep.subr.bf16.mxu0 0
      %815 = vmatpush2.bf16.msra.mxu0 0
      %816 = vmatprep.subr.bf16.mxu0 0
      %817 = vmatpush2.bf16.msra.mxu0 0
      %818 = vmatprep.subr.bf16.mxu0 0
      %819 = vmatpush2.bf16.msra.mxu0 0
      %820 = vmatprep.subr.bf16.mxu0 0
      %821 = vmatpush2.bf16.msra.mxu0 0
      %822 = vmatprep.subr.bf16.mxu0 0
      %823 = vmatpush2.bf16.msra.mxu0 0
      %824 = vmatprep.mubr.bf16.mxu0 0
      %825 = vmatmul.mubr.bf16.gmra.mxu0 %v746
      %v826 = vpop.f32.mrf.mxu0
      %v827 = vadd.f32 0.0, %v826
      %v828 = vpop.f32.mrf.mxu0
      %v829 = vadd.f32 0.0, %v828
      %v830 = vpop.f32.mrf.mxu0
      %v831 = vpop.f32.mrf.mxu0
      %832 = vdwg.mxu0
      %833 = vmatprep.subr.bf16.mxu0 0
      %834 = vmatpush1.bf16.msra.mxu0 0
      %835 = vmatprep.subr.bf16.mxu0 0
      %836 = vmatpush1.bf16.msra.mxu0 0
      %837 = vmatprep.subr.bf16.mxu0 0
      %838 = vmatpush1.bf16.msra.mxu0 0
      %839 = vmatprep.subr.bf16.mxu0 0
      %840 = vmatpush1.bf16.msra.mxu0 0
      %841 = vmatprep.subr.bf16.mxu0 0
      %842 = vmatpush1.bf16.msra.mxu0 0
      %843 = vmatprep.subr.bf16.mxu0 0
      %844 = vmatpush1.bf16.msra.mxu0 0
      %845 = vmatprep.subr.bf16.mxu0 0
      %846 = vmatpush1.bf16.msra.mxu0 0
      %847 = vmatprep.subr.bf16.mxu0 %v574
      %848 = vmatpush1.bf16.msra.mxu0 %v571
      %849 = vmatprep.subr.bf16.mxu0 0
      %850 = vmatpush2.bf16.msra.mxu0 0
      %851 = vmatprep.subr.bf16.mxu0 0
      %852 = vmatpush2.bf16.msra.mxu0 0
      %853 = vmatprep.subr.bf16.mxu0 0
      %854 = vmatpush2.bf16.msra.mxu0 0
      %855 = vmatprep.subr.bf16.mxu0 0
      %856 = vmatpush2.bf16.msra.mxu0 0
      %857 = vmatprep.subr.bf16.mxu0 0
      %858 = vmatpush2.bf16.msra.mxu0 0
      %859 = vmatprep.subr.bf16.mxu0 0
      %860 = vmatpush2.bf16.msra.mxu0 0
      %861 = vmatprep.subr.bf16.mxu0 0
      %862 = vmatpush2.bf16.msra.mxu0 0
      %863 = vmatprep.subr.bf16.mxu0 0
      %864 = vmatpush2.bf16.msra.mxu0 0
      %865 = vmatprep.mubr.bf16.mxu0 0
      %866 = vmatmul.mubr.bf16.gmra.mxu0 %v746
      %v867 = vpop.f32.mrf.mxu0
      %v868 = vadd.f32 0.0, %v867
      %v869 = vpop.f32.mrf.mxu0
      %v870 = vadd.f32 0.0, %v869
      %v871 = vpop.f32.mrf.mxu0
      %v872 = vpop.f32.mrf.mxu0
      %873 = vdwg.mxu0
      %874 = vmatprep.subr.bf16.mxu0 0
      %875 = vmatpush1.bf16.msra.mxu0 0
      %876 = vmatprep.subr.bf16.mxu0 0
      %877 = vmatpush1.bf16.msra.mxu0 0
      %878 = vmatprep.subr.bf16.mxu0 0
      %879 = vmatpush1.bf16.msra.mxu0 0
      %880 = vmatprep.subr.bf16.mxu0 0
      %881 = vmatpush1.bf16.msra.mxu0 0
      %882 = vmatprep.subr.bf16.mxu0 0
      %883 = vmatpush1.bf16.msra.mxu0 0
      %884 = vmatprep.subr.bf16.mxu0 0
      %885 = vmatpush1.bf16.msra.mxu0 0
      %886 = vmatprep.subr.bf16.mxu0 0
      %887 = vmatpush1.bf16.msra.mxu0 0
      %888 = vmatprep.subr.bf16.mxu0 %v749
      %889 = vmatpush1.bf16.msra.mxu0 %v577
      %890 = vmatprep.subr.bf16.mxu0 0
      %891 = vmatpush2.bf16.msra.mxu0 0
      %892 = vmatprep.subr.bf16.mxu0 0
      %893 = vmatpush2.bf16.msra.mxu0 0
      %894 = vmatprep.subr.bf16.mxu0 0
      %895 = vmatpush2.bf16.msra.mxu0 0
      %896 = vmatprep.subr.bf16.mxu0 0
      %897 = vmatpush2.bf16.msra.mxu0 0
      %898 = vmatprep.subr.bf16.mxu0 0
      %899 = vmatpush2.bf16.msra.mxu0 0
      %900 = vmatprep.subr.bf16.mxu0 0
      %901 = vmatpush2.bf16.msra.mxu0 0
      %902 = vmatprep.subr.bf16.mxu0 0
      %903 = vmatpush2.bf16.msra.mxu0 0
      %904 = vmatprep.subr.bf16.mxu0 0
      %905 = vmatpush2.bf16.msra.mxu0 0
      %906 = vmatprep.mubr.bf16.mxu0 0
      %907 = vmatmul.mubr.bf16.gmra.mxu0 %v746
      %v908 = vpop.f32.mrf.mxu0
      %v909 = vadd.f32 0.0, %v908
      %v910 = vpop.f32.mrf.mxu0
      %v911 = vadd.f32 0.0, %v910
      %v912 = vpop.f32.mrf.mxu0
      %v913 = vpop.f32.mrf.mxu0
      %914 = vdwg.mxu0
      %v915 = vadd.f32 %v614, %v786
      %v916 = vadd.f32 %v616, %v788
      %v917 = vadd.f32 %v655, %v827
      %v918 = vadd.f32 %v657, %v829
      %v919 = vadd.f32 %v696, %v868
      %v920 = vadd.f32 %v698, %v870
      %v921 = vadd.f32 %v737, %v909
      %v922 = vadd.f32 %v739, %v911
      %923 = vrot.lane.b32.xlu0 %v320, 127
      %v924 = vpop.permute.xlu0 %923
      %925 = vrot.lane.b32.xlu0 %v321, 127
      %v926 = vpop.permute.xlu0 %925
      %927 = vrot.lane.b32.xlu0 %v322, 127
      %v928 = vpop.permute.xlu0 %927
      %929 = vrot.lane.b32.xlu0 %v323, 127
      %v930 = vpop.permute.xlu0 %929
      %931 = vrot.lane.b32.xlu0 %v324, 127
      %v932 = vpop.permute.xlu0 %931
      %933 = vrot.lane.b32.xlu0 %v325, 127
      %v934 = vpop.permute.xlu0 %933
      %935 = vrot.lane.b32.xlu0 %v326, 127
      %v936 = vpop.permute.xlu0 %935
      %937 = vrot.lane.b32.xlu0 %v327, 127
      %v938 = vpop.permute.xlu0 %937
      %939 = vrot.lane.b32.xlu0 %v307, 127
      %v940 = vpop.permute.xlu0 %939
      %vm941 = vcmask 1039360
      %v942 = vsel %vm941, %v924, %v926
      %v943 = vsel %vm941, %v926, %v928
      %v944 = vsel %vm941, %v928, %v930
      %v945 = vsel %vm941, %v930, %v932
      %v946 = vsel %vm941, %v932, %v934
      %v947 = vsel %vm941, %v934, %v936
      %v948 = vsel %vm941, %v936, %v938
      %v949 = vsel %vm941, %v938, %v940
      %vm950 = vcmask 1039360
      %v953 = vsel %vm950, %v940, 0
      %s954 = scalar_lea.vmem %s2, 12
      %v955 = vld [vmem:[%s954] sm:$0xf]
      %v957 = vsel %vm359, %v955, 0
      %v960 = vsel %vm363, %v942, 0
      %v963 = vsel %vm363, %v943, 0
      %v966 = vsel %vm363, %v944, 0
      %v969 = vsel %vm363, %v945, 0
      %v972 = vsel %vm363, %v946, 0
      %v975 = vsel %vm363, %v947, 0
      %v978 = vsel %vm363, %v948, 0
      %v981 = vsel %vm363, %v949, 0
      %983 = vmatprep.subr.bf16.mxu0 0
      %984 = vmatpush1.bf16.msra.mxu0 0
      %985 = vmatprep.subr.bf16.mxu0 0
      %986 = vmatpush1.bf16.msra.mxu0 0
      %987 = vmatprep.subr.bf16.mxu0 0
      %988 = vmatpush1.bf16.msra.mxu0 0
      %989 = vmatprep.subr.bf16.mxu0 0
      %990 = vmatpush1.bf16.msra.mxu0 0
      %991 = vmatprep.subr.bf16.mxu0 0
      %992 = vmatpush1.bf16.msra.mxu0 0
      %993 = vmatprep.subr.bf16.mxu0 0
      %994 = vmatpush1.bf16.msra.mxu0 0
      %995 = vmatprep.subr.bf16.mxu0 0
      %996 = vmatpush1.bf16.msra.mxu0 0
      %997 = vmatprep.subr.bf16.mxu0 %v963
      %998 = vmatpush1.bf16.msra.mxu0 %v960
      %999 = vmatprep.subr.bf16.mxu0 0
      %1000 = vmatpush2.bf16.msra.mxu0 0
      %1001 = vmatprep.subr.bf16.mxu0 0
      %1002 = vmatpush2.bf16.msra.mxu0 0
      %1003 = vmatprep.subr.bf16.mxu0 0
      %1004 = vmatpush2.bf16.msra.mxu0 0
      %1005 = vmatprep.subr.bf16.mxu0 0
      %1006 = vmatpush2.bf16.msra.mxu0 0
      %1007 = vmatprep.subr.bf16.mxu0 0
      %1008 = vmatpush2.bf16.msra.mxu0 0
      %1009 = vmatprep.subr.bf16.mxu0 0
      %1010 = vmatpush2.bf16.msra.mxu0 0
      %1011 = vmatprep.subr.bf16.mxu0 0
      %1012 = vmatpush2.bf16.msra.mxu0 0
      %1013 = vmatprep.subr.bf16.mxu0 0
      %1014 = vmatpush2.bf16.msra.mxu0 0
      %1015 = vmatprep.mubr.bf16.mxu0 0
      %1016 = vmatmul.mubr.bf16.gmra.mxu0 %v957
      %v1017 = vpop.f32.mrf.mxu0
      %v1018 = vadd.f32 0.0, %v1017
      %v1019 = vpop.f32.mrf.mxu0
      %v1020 = vadd.f32 0.0, %v1019
      %v1021 = vpop.f32.mrf.mxu0
      %v1022 = vpop.f32.mrf.mxu0
      %1023 = vdwg.mxu0
      %1024 = vmatprep.subr.bf16.mxu0 0
      %1025 = vmatpush1.bf16.msra.mxu0 0
      %1026 = vmatprep.subr.bf16.mxu0 0
      %1027 = vmatpush1.bf16.msra.mxu0 0
      %1028 = vmatprep.subr.bf16.mxu0 0
      %1029 = vmatpush1.bf16.msra.mxu0 0
      %1030 = vmatprep.subr.bf16.mxu0 0
      %1031 = vmatpush1.bf16.msra.mxu0 0
      %1032 = vmatprep.subr.bf16.mxu0 0
      %1033 = vmatpush1.bf16.msra.mxu0 0
      %1034 = vmatprep.subr.bf16.mxu0 0
      %1035 = vmatpush1.bf16.msra.mxu0 0
      %1036 = vmatprep.subr.bf16.mxu0 0
      %1037 = vmatpush1.bf16.msra.mxu0 0
      %1038 = vmatprep.subr.bf16.mxu0 %v969
      %1039 = vmatpush1.bf16.msra.mxu0 %v966
      %1040 = vmatprep.subr.bf16.mxu0 0
      %1041 = vmatpush2.bf16.msra.mxu0 0
      %1042 = vmatprep.subr.bf16.mxu0 0
      %1043 = vmatpush2.bf16.msra.mxu0 0
      %1044 = vmatprep.subr.bf16.mxu0 0
      %1045 = vmatpush2.bf16.msra.mxu0 0
      %1046 = vmatprep.subr.bf16.mxu0 0
      %1047 = vmatpush2.bf16.msra.mxu0 0
      %1048 = vmatprep.subr.bf16.mxu0 0
      %1049 = vmatpush2.bf16.msra.mxu0 0
      %1050 = vmatprep.subr.bf16.mxu0 0
      %1051 = vmatpush2.bf16.msra.mxu0 0
      %1052 = vmatprep.subr.bf16.mxu0 0
      %1053 = vmatpush2.bf16.msra.mxu0 0
      %1054 = vmatprep.subr.bf16.mxu0 0
      %1055 = vmatpush2.bf16.msra.mxu0 0
      %1056 = vmatprep.mubr.bf16.mxu0 0
      %1057 = vmatmul.mubr.bf16.gmra.mxu0 %v957
      %v1058 = vpop.f32.mrf.mxu0
      %v1059 = vadd.f32 0.0, %v1058
      %v1060 = vpop.f32.mrf.mxu0
      %v1061 = vadd.f32 0.0, %v1060
      %v1062 = vpop.f32.mrf.mxu0
      %v1063 = vpop.f32.mrf.mxu0
      %1064 = vdwg.mxu0
      %1065 = vmatprep.subr.bf16.mxu0 0
      %1066 = vmatpush1.bf16.msra.mxu0 0
      %1067 = vmatprep.subr.bf16.mxu0 0
      %1068 = vmatpush1.bf16.msra.mxu0 0
      %1069 = vmatprep.subr.bf16.mxu0 0
      %1070 = vmatpush1.bf16.msra.mxu0 0
      %1071 = vmatprep.subr.bf16.mxu0 0
      %1072 = vmatpush1.bf16.msra.mxu0 0
      %1073 = vmatprep.subr.bf16.mxu0 0
      %1074 = vmatpush1.bf16.msra.mxu0 0
      %1075 = vmatprep.subr.bf16.mxu0 0
      %1076 = vmatpush1.bf16.msra.mxu0 0
      %1077 = vmatprep.subr.bf16.mxu0 0
      %1078 = vmatpush1.bf16.msra.mxu0 0
      %1079 = vmatprep.subr.bf16.mxu0 %v975
      %1080 = vmatpush1.bf16.msra.mxu0 %v972
      %1081 = vmatprep.subr.bf16.mxu0 0
      %1082 = vmatpush2.bf16.msra.mxu0 0
      %1083 = vmatprep.subr.bf16.mxu0 0
      %1084 = vmatpush2.bf16.msra.mxu0 0
      %1085 = vmatprep.subr.bf16.mxu0 0
      %1086 = vmatpush2.bf16.msra.mxu0 0
      %1087 = vmatprep.subr.bf16.mxu0 0
      %1088 = vmatpush2.bf16.msra.mxu0 0
      %1089 = vmatprep.subr.bf16.mxu0 0
      %1090 = vmatpush2.bf16.msra.mxu0 0
      %1091 = vmatprep.subr.bf16.mxu0 0
      %1092 = vmatpush2.bf16.msra.mxu0 0
      %1093 = vmatprep.subr.bf16.mxu0 0
      %1094 = vmatpush2.bf16.msra.mxu0 0
      %1095 = vmatprep.subr.bf16.mxu0 0
      %1096 = vmatpush2.bf16.msra.mxu0 0
      %1097 = vmatprep.mubr.bf16.mxu0 0
      %1098 = vmatmul.mubr.bf16.gmra.mxu0 %v957
      %v1099 = vpop.f32.mrf.mxu0
      %v1100 = vadd.f32 0.0, %v1099
      %v1101 = vpop.f32.mrf.mxu0
      %v1102 = vadd.f32 0.0, %v1101
      %v1103 = vpop.f32.mrf.mxu0
      %v1104 = vpop.f32.mrf.mxu0
      %1105 = vdwg.mxu0
      %1106 = vmatprep.subr.bf16.mxu0 0
      %1107 = vmatpush1.bf16.msra.mxu0 0
      %1108 = vmatprep.subr.bf16.mxu0 0
      %1109 = vmatpush1.bf16.msra.mxu0 0
      %1110 = vmatprep.subr.bf16.mxu0 0
      %1111 = vmatpush1.bf16.msra.mxu0 0
      %1112 = vmatprep.subr.bf16.mxu0 0
      %1113 = vmatpush1.bf16.msra.mxu0 0
      %1114 = vmatprep.subr.bf16.mxu0 0
      %1115 = vmatpush1.bf16.msra.mxu0 0
      %1116 = vmatprep.subr.bf16.mxu0 0
      %1117 = vmatpush1.bf16.msra.mxu0 0
      %1118 = vmatprep.subr.bf16.mxu0 0
      %1119 = vmatpush1.bf16.msra.mxu0 0
      %1120 = vmatprep.subr.bf16.mxu0 %v981
      %1121 = vmatpush1.bf16.msra.mxu0 %v978
      %1122 = vmatprep.subr.bf16.mxu0 0
      %1123 = vmatpush2.bf16.msra.mxu0 0
      %1124 = vmatprep.subr.bf16.mxu0 0
      %1125 = vmatpush2.bf16.msra.mxu0 0
      %1126 = vmatprep.subr.bf16.mxu0 0
      %1127 = vmatpush2.bf16.msra.mxu0 0
      %1128 = vmatprep.subr.bf16.mxu0 0
      %1129 = vmatpush2.bf16.msra.mxu0 0
      %1130 = vmatprep.subr.bf16.mxu0 0
      %1131 = vmatpush2.bf16.msra.mxu0 0
      %1132 = vmatprep.subr.bf16.mxu0 0
      %1133 = vmatpush2.bf16.msra.mxu0 0
      %1134 = vmatprep.subr.bf16.mxu0 0
      %1135 = vmatpush2.bf16.msra.mxu0 0
      %1136 = vmatprep.subr.bf16.mxu0 0
      %1137 = vmatpush2.bf16.msra.mxu0 0
      %1138 = vmatprep.mubr.bf16.mxu0 0
      %1139 = vmatmul.mubr.bf16.gmra.mxu0 %v957
      %v1140 = vpop.f32.mrf.mxu0
      %v1141 = vadd.f32 0.0, %v1140
      %v1142 = vpop.f32.mrf.mxu0
      %v1143 = vadd.f32 0.0, %v1142
      %v1144 = vpop.f32.mrf.mxu0
      %v1145 = vpop.f32.mrf.mxu0
      %1146 = vdwg.mxu0
      %v1147 = vadd.f32 %v915, %v1018
      %v1148 = vadd.f32 %v916, %v1020
      %v1149 = vadd.f32 %v917, %v1059
      %v1150 = vadd.f32 %v918, %v1061
      %v1151 = vadd.f32 %v919, %v1100
      %v1152 = vadd.f32 %v920, %v1102
      %v1153 = vadd.f32 %v921, %v1141
      %v1154 = vadd.f32 %v922, %v1143
      %s1155 = scalar_lea.vmem %s2, 16
      %v1156 = vld [vmem:[%s1155] sm:$0xf]
      %1158 = vrot.lane.b32.xlu0 %v942, 64
      %v1159 = vpop.permute.xlu0 %1158
      %1160 = vrot.lane.b32.xlu0 %v943, 64
      %v1161 = vpop.permute.xlu0 %1160
      %1162 = vrot.lane.b32.xlu0 %v944, 64
      %v1163 = vpop.permute.xlu0 %1162
      %1164 = vrot.lane.b32.xlu0 %v945, 64
      %v1165 = vpop.permute.xlu0 %1164
      %1166 = vrot.lane.b32.xlu0 %v946, 64
      %v1167 = vpop.permute.xlu0 %1166
      %1168 = vrot.lane.b32.xlu0 %v947, 64
      %v1169 = vpop.permute.xlu0 %1168
      %1170 = vrot.lane.b32.xlu0 %v948, 64
      %v1171 = vpop.permute.xlu0 %1170
      %1172 = vrot.lane.b32.xlu0 %v949, 64
      %v1173 = vpop.permute.xlu0 %1172
      %1174 = vrot.lane.b32.xlu0 %v953, 64
      %v1175 = vpop.permute.xlu0 %1174
      %v1176 = vsel %vm350, %v1159, %v1161
      %v1177 = vsel %vm350, %v1161, %v1163
      %v1178 = vsel %vm350, %v1163, %v1165
      %v1179 = vsel %vm350, %v1165, %v1167
      %v1180 = vsel %vm350, %v1167, %v1169
      %v1181 = vsel %vm350, %v1169, %v1171
      %v1182 = vsel %vm350, %v1171, %v1173
      %v1183 = vsel %vm350, %v1173, %v1175
      %v1185 = vsel %vm359, %v1156, 0
      %v1188 = vsel %vm363, %v1176, 0
      %v1191 = vsel %vm363, %v1177, 0
      %v1194 = vsel %vm363, %v1178, 0
      %v1197 = vsel %vm363, %v1179, 0
      %v1200 = vsel %vm363, %v1180, 0
      %v1203 = vsel %vm363, %v1181, 0
      %v1206 = vsel %vm363, %v1182, 0
      %v1209 = vsel %vm363, %v1183, 0
      %1211 = vmatprep.subr.bf16.mxu0 0
      %1212 = vmatpush1.bf16.msra.mxu0 0
      %1213 = vmatprep.subr.bf16.mxu0 0
      %1214 = vmatpush1.bf16.msra.mxu0 0
      %1215 = vmatprep.subr.bf16.mxu0 0
      %1216 = vmatpush1.bf16.msra.mxu0 0
      %1217 = vmatprep.subr.bf16.mxu0 0
      %1218 = vmatpush1.bf16.msra.mxu0 0
      %1219 = vmatprep.subr.bf16.mxu0 0
      %1220 = vmatpush1.bf16.msra.mxu0 0
      %1221 = vmatprep.subr.bf16.mxu0 0
      %1222 = vmatpush1.bf16.msra.mxu0 0
      %1223 = vmatprep.subr.bf16.mxu0 0
      %1224 = vmatpush1.bf16.msra.mxu0 0
      %1225 = vmatprep.subr.bf16.mxu0 %v1191
      %1226 = vmatpush1.bf16.msra.mxu0 %v1188
      %1227 = vmatprep.subr.bf16.mxu0 0
      %1228 = vmatpush2.bf16.msra.mxu0 0
      %1229 = vmatprep.subr.bf16.mxu0 0
      %1230 = vmatpush2.bf16.msra.mxu0 0
      %1231 = vmatprep.subr.bf16.mxu0 0
      %1232 = vmatpush2.bf16.msra.mxu0 0
      %1233 = vmatprep.subr.bf16.mxu0 0
      %1234 = vmatpush2.bf16.msra.mxu0 0
      %1235 = vmatprep.subr.bf16.mxu0 0
      %1236 = vmatpush2.bf16.msra.mxu0 0
      %1237 = vmatprep.subr.bf16.mxu0 0
      %1238 = vmatpush2.bf16.msra.mxu0 0
      %1239 = vmatprep.subr.bf16.mxu0 0
      %1240 = vmatpush2.bf16.msra.mxu0 0
      %1241 = vmatprep.subr.bf16.mxu0 0
      %1242 = vmatpush2.bf16.msra.mxu0 0
      %1243 = vmatprep.mubr.bf16.mxu0 0
      %1244 = vmatmul.mubr.bf16.gmra.mxu0 %v1185
      %v1245 = vpop.f32.mrf.mxu0
      %v1246 = vadd.f32 0.0, %v1245
      %v1247 = vpop.f32.mrf.mxu0
      %v1248 = vadd.f32 0.0, %v1247
      %v1249 = vpop.f32.mrf.mxu0
      %v1250 = vpop.f32.mrf.mxu0
      %1251 = vdwg.mxu0
      %1252 = vmatprep.subr.bf16.mxu0 0
      %1253 = vmatpush1.bf16.msra.mxu0 0
      %1254 = vmatprep.subr.bf16.mxu0 0
      %1255 = vmatpush1.bf16.msra.mxu0 0
      %1256 = vmatprep.subr.bf16.mxu0 0
      %1257 = vmatpush1.bf16.msra.mxu0 0
      %1258 = vmatprep.subr.bf16.mxu0 0
      %1259 = vmatpush1.bf16.msra.mxu0 0
      %1260 = vmatprep.subr.bf16.mxu0 0
      %1261 = vmatpush1.bf16.msra.mxu0 0
      %1262 = vmatprep.subr.bf16.mxu0 0
      %1263 = vmatpush1.bf16.msra.mxu0 0
      %1264 = vmatprep.subr.bf16.mxu0 0
      %1265 = vmatpush1.bf16.msra.mxu0 0
      %1266 = vmatprep.subr.bf16.mxu0 %v1197
      %1267 = vmatpush1.bf16.msra.mxu0 %v1194
      %1268 = vmatprep.subr.bf16.mxu0 0
      %1269 = vmatpush2.bf16.msra.mxu0 0
      %1270 = vmatprep.subr.bf16.mxu0 0
      %1271 = vmatpush2.bf16.msra.mxu0 0
      %1272 = vmatprep.subr.bf16.mxu0 0
      %1273 = vmatpush2.bf16.msra.mxu0 0
      %1274 = vmatprep.subr.bf16.mxu0 0
      %1275 = vmatpush2.bf16.msra.mxu0 0
      %1276 = vmatprep.subr.bf16.mxu0 0
      %1277 = vmatpush2.bf16.msra.mxu0 0
      %1278 = vmatprep.subr.bf16.mxu0 0
      %1279 = vmatpush2.bf16.msra.mxu0 0
      %1280 = vmatprep.subr.bf16.mxu0 0
      %1281 = vmatpush2.bf16.msra.mxu0 0
      %1282 = vmatprep.subr.bf16.mxu0 0
      %1283 = vmatpush2.bf16.msra.mxu0 0
      %1284 = vmatprep.mubr.bf16.mxu0 0
      %1285 = vmatmul.mubr.bf16.gmra.mxu0 %v1185
      %v1286 = vpop.f32.mrf.mxu0
      %v1287 = vadd.f32 0.0, %v1286
      %v1288 = vpop.f32.mrf.mxu0
      %v1289 = vadd.f32 0.0, %v1288
      %v1290 = vpop.f32.mrf.mxu0
      %v1291 = vpop.f32.mrf.mxu0
      %1292 = vdwg.mxu0
      %1293 = vmatprep.subr.bf16.mxu0 0
      %1294 = vmatpush1.bf16.msra.mxu0 0
      %1295 = vmatprep.subr.bf16.mxu0 0
      %1296 = vmatpush1.bf16.msra.mxu0 0
      %1297 = vmatprep.subr.bf16.mxu0 0
      %1298 = vmatpush1.bf16.msra.mxu0 0
      %1299 = vmatprep.subr.bf16.mxu0 0
      %1300 = vmatpush1.bf16.msra.mxu0 0
      %1301 = vmatprep.subr.bf16.mxu0 0
      %1302 = vmatpush1.bf16.msra.mxu0 0
      %1303 = vmatprep.subr.bf16.mxu0 0
      %1304 = vmatpush1.bf16.msra.mxu0 0
      %1305 = vmatprep.subr.bf16.mxu0 0
      %1306 = vmatpush1.bf16.msra.mxu0 0
      %1307 = vmatprep.subr.bf16.mxu0 %v1203
      %1308 = vmatpush1.bf16.msra.mxu0 %v1200
      %1309 = vmatprep.subr.bf16.mxu0 0
      %1310 = vmatpush2.bf16.msra.mxu0 0
      %1311 = vmatprep.subr.bf16.mxu0 0
      %1312 = vmatpush2.bf16.msra.mxu0 0
      %1313 = vmatprep.subr.bf16.mxu0 0
      %1314 = vmatpush2.bf16.msra.mxu0 0
      %1315 = vmatprep.subr.bf16.mxu0 0
      %1316 = vmatpush2.bf16.msra.mxu0 0
      %1317 = vmatprep.subr.bf16.mxu0 0
      %1318 = vmatpush2.bf16.msra.mxu0 0
      %1319 = vmatprep.subr.bf16.mxu0 0
      %1320 = vmatpush2.bf16.msra.mxu0 0
      %1321 = vmatprep.subr.bf16.mxu0 0
      %1322 = vmatpush2.bf16.msra.mxu0 0
      %1323 = vmatprep.subr.bf16.mxu0 0
      %1324 = vmatpush2.bf16.msra.mxu0 0
      %1325 = vmatprep.mubr.bf16.mxu0 0
      %1326 = vmatmul.mubr.bf16.gmra.mxu0 %v1185
      %v1327 = vpop.f32.mrf.mxu0
      %v1328 = vadd.f32 0.0, %v1327
      %v1329 = vpop.f32.mrf.mxu0
      %v1330 = vadd.f32 0.0, %v1329
      %v1331 = vpop.f32.mrf.mxu0
      %v1332 = vpop.f32.mrf.mxu0
      %1333 = vdwg.mxu0
      %1334 = vmatprep.subr.bf16.mxu0 0
      %1335 = vmatpush1.bf16.msra.mxu0 0
      %1336 = vmatprep.subr.bf16.mxu0 0
      %1337 = vmatpush1.bf16.msra.mxu0 0
      %1338 = vmatprep.subr.bf16.mxu0 0
      %1339 = vmatpush1.bf16.msra.mxu0 0
      %1340 = vmatprep.subr.bf16.mxu0 0
      %1341 = vmatpush1.bf16.msra.mxu0 0
      %1342 = vmatprep.subr.bf16.mxu0 0
      %1343 = vmatpush1.bf16.msra.mxu0 0
      %1344 = vmatprep.subr.bf16.mxu0 0
      %1345 = vmatpush1.bf16.msra.mxu0 0
      %1346 = vmatprep.subr.bf16.mxu0 0
      %1347 = vmatpush1.bf16.msra.mxu0 0
      %1348 = vmatprep.subr.bf16.mxu0 %v1209
      %1349 = vmatpush1.bf16.msra.mxu0 %v1206
      %1350 = vmatprep.subr.bf16.mxu0 0
      %1351 = vmatpush2.bf16.msra.mxu0 0
      %1352 = vmatprep.subr.bf16.mxu0 0
      %1353 = vmatpush2.bf16.msra.mxu0 0
      %1354 = vmatprep.subr.bf16.mxu0 0
      %1355 = vmatpush2.bf16.msra.mxu0 0
      %1356 = vmatprep.subr.bf16.mxu0 0
      %1357 = vmatpush2.bf16.msra.mxu0 0
      %1358 = vmatprep.subr.bf16.mxu0 0
      %1359 = vmatpush2.bf16.msra.mxu0 0
      %1360 = vmatprep.subr.bf16.mxu0 0
      %1361 = vmatpush2.bf16.msra.mxu0 0
      %1362 = vmatprep.subr.bf16.mxu0 0
      %1363 = vmatpush2.bf16.msra.mxu0 0
      %1364 = vmatprep.subr.bf16.mxu0 0
      %1365 = vmatpush2.bf16.msra.mxu0 0
      %1366 = vmatprep.mubr.bf16.mxu0 0
      %1367 = vmatmul.mubr.bf16.gmra.mxu0 %v1185
      %v1368 = vpop.f32.mrf.mxu0
      %v1369 = vadd.f32 0.0, %v1368
      %v1370 = vpop.f32.mrf.mxu0
      %v1371 = vadd.f32 0.0, %v1370
      %v1372 = vpop.f32.mrf.mxu0
      %v1373 = vpop.f32.mrf.mxu0
      %1374 = vdwg.mxu0
      %v1375 = vadd.f32 %v1147, %v1246
      %v1376 = vadd.f32 %v1148, %v1248
      %v1377 = vadd.f32 %v1149, %v1287
      %v1378 = vadd.f32 %v1150, %v1289
      %v1379 = vadd.f32 %v1151, %v1328
      %v1380 = vadd.f32 %v1152, %v1330
      %v1381 = vadd.f32 %v1153, %v1369
      %v1382 = vadd.f32 %v1154, %v1371
      %s1383 = scalar_lea.vmem %s2, 20
      %v1384 = vld [vmem:[%s1383] sm:$0xf]
      %v1386 = vsel %vm359, %v1384, 0
      %v1388 = vsel %vm363, %v953, 0
      %1390 = vmatprep.subr.bf16.mxu0 0
      %1391 = vmatpush1.bf16.msra.mxu0 0
      %1392 = vmatprep.subr.bf16.mxu0 0
      %1393 = vmatpush1.bf16.msra.mxu0 0
      %1394 = vmatprep.subr.bf16.mxu0 0
      %1395 = vmatpush1.bf16.msra.mxu0 0
      %1396 = vmatprep.subr.bf16.mxu0 0
      %1397 = vmatpush1.bf16.msra.mxu0 0
      %1398 = vmatprep.subr.bf16.mxu0 0
      %1399 = vmatpush1.bf16.msra.mxu0 0
      %1400 = vmatprep.subr.bf16.mxu0 0
      %1401 = vmatpush1.bf16.msra.mxu0 0
      %1402 = vmatprep.subr.bf16.mxu0 0
      %1403 = vmatpush1.bf16.msra.mxu0 0
      %1404 = vmatprep.subr.bf16.mxu0 %v966
      %1405 = vmatpush1.bf16.msra.mxu0 %v963
      %1406 = vmatprep.subr.bf16.mxu0 0
      %1407 = vmatpush2.bf16.msra.mxu0 0
      %1408 = vmatprep.subr.bf16.mxu0 0
      %1409 = vmatpush2.bf16.msra.mxu0 0
      %1410 = vmatprep.subr.bf16.mxu0 0
      %1411 = vmatpush2.bf16.msra.mxu0 0
      %1412 = vmatprep.subr.bf16.mxu0 0
      %1413 = vmatpush2.bf16.msra.mxu0 0
      %1414 = vmatprep.subr.bf16.mxu0 0
      %1415 = vmatpush2.bf16.msra.mxu0 0
      %1416 = vmatprep.subr.bf16.mxu0 0
      %1417 = vmatpush2.bf16.msra.mxu0 0
      %1418 = vmatprep.subr.bf16.mxu0 0
      %1419 = vmatpush2.bf16.msra.mxu0 0
      %1420 = vmatprep.subr.bf16.mxu0 0
      %1421 = vmatpush2.bf16.msra.mxu0 0
      %1422 = vmatprep.mubr.bf16.mxu0 0
      %1423 = vmatmul.mubr.bf16.gmra.mxu0 %v1386
      %v1424 = vpop.f32.mrf.mxu0
      %v1425 = vadd.f32 0.0, %v1424
      %v1426 = vpop.f32.mrf.mxu0
      %v1427 = vadd.f32 0.0, %v1426
      %v1428 = vpop.f32.mrf.mxu0
      %v1429 = vpop.f32.mrf.mxu0
      %1430 = vdwg.mxu0
      %1431 = vmatprep.subr.bf16.mxu0 0
      %1432 = vmatpush1.bf16.msra.mxu0 0
      %1433 = vmatprep.subr.bf16.mxu0 0
      %1434 = vmatpush1.bf16.msra.mxu0 0
      %1435 = vmatprep.subr.bf16.mxu0 0
      %1436 = vmatpush1.bf16.msra.mxu0 0
      %1437 = vmatprep.subr.bf16.mxu0 0
      %1438 = vmatpush1.bf16.msra.mxu0 0
      %1439 = vmatprep.subr.bf16.mxu0 0
      %1440 = vmatpush1.bf16.msra.mxu0 0
      %1441 = vmatprep.subr.bf16.mxu0 0
      %1442 = vmatpush1.bf16.msra.mxu0 0
      %1443 = vmatprep.subr.bf16.mxu0 0
      %1444 = vmatpush1.bf16.msra.mxu0 0
      %1445 = vmatprep.subr.bf16.mxu0 %v972
      %1446 = vmatpush1.bf16.msra.mxu0 %v969
      %1447 = vmatprep.subr.bf16.mxu0 0
      %1448 = vmatpush2.bf16.msra.mxu0 0
      %1449 = vmatprep.subr.bf16.mxu0 0
      %1450 = vmatpush2.bf16.msra.mxu0 0
      %1451 = vmatprep.subr.bf16.mxu0 0
      %1452 = vmatpush2.bf16.msra.mxu0 0
      %1453 = vmatprep.subr.bf16.mxu0 0
      %1454 = vmatpush2.bf16.msra.mxu0 0
      %1455 = vmatprep.subr.bf16.mxu0 0
      %1456 = vmatpush2.bf16.msra.mxu0 0
      %1457 = vmatprep.subr.bf16.mxu0 0
      %1458 = vmatpush2.bf16.msra.mxu0 0
      %1459 = vmatprep.subr.bf16.mxu0 0
      %1460 = vmatpush2.bf16.msra.mxu0 0
      %1461 = vmatprep.subr.bf16.mxu0 0
      %1462 = vmatpush2.bf16.msra.mxu0 0
      %1463 = vmatprep.mubr.bf16.mxu0 0
      %1464 = vmatmul.mubr.bf16.gmra.mxu0 %v1386
      %v1465 = vpop.f32.mrf.mxu0
      %v1466 = vadd.f32 0.0, %v1465
      %v1467 = vpop.f32.mrf.mxu0
      %v1468 = vadd.f32 0.0, %v1467
      %v1469 = vpop.f32.mrf.mxu0
      %v1470 = vpop.f32.mrf.mxu0
      %1471 = vdwg.mxu0
      %1472 = vmatprep.subr.bf16.mxu0 0
      %1473 = vmatpush1.bf16.msra.mxu0 0
      %1474 = vmatprep.subr.bf16.mxu0 0
      %1475 = vmatpush1.bf16.msra.mxu0 0
      %1476 = vmatprep.subr.bf16.mxu0 0
      %1477 = vmatpush1.bf16.msra.mxu0 0
      %1478 = vmatprep.subr.bf16.mxu0 0
      %1479 = vmatpush1.bf16.msra.mxu0 0
      %1480 = vmatprep.subr.bf16.mxu0 0
      %1481 = vmatpush1.bf16.msra.mxu0 0
      %1482 = vmatprep.subr.bf16.mxu0 0
      %1483 = vmatpush1.bf16.msra.mxu0 0
      %1484 = vmatprep.subr.bf16.mxu0 0
      %1485 = vmatpush1.bf16.msra.mxu0 0
      %1486 = vmatprep.subr.bf16.mxu0 %v978
      %1487 = vmatpush1.bf16.msra.mxu0 %v975
      %1488 = vmatprep.subr.bf16.mxu0 0
      %1489 = vmatpush2.bf16.msra.mxu0 0
      %1490 = vmatprep.subr.bf16.mxu0 0
      %1491 = vmatpush2.bf16.msra.mxu0 0
      %1492 = vmatprep.subr.bf16.mxu0 0
      %1493 = vmatpush2.bf16.msra.mxu0 0
      %1494 = vmatprep.subr.bf16.mxu0 0
      %1495 = vmatpush2.bf16.msra.mxu0 0
      %1496 = vmatprep.subr.bf16.mxu0 0
      %1497 = vmatpush2.bf16.msra.mxu0 0
      %1498 = vmatprep.subr.bf16.mxu0 0
      %1499 = vmatpush2.bf16.msra.mxu0 0
      %1500 = vmatprep.subr.bf16.mxu0 0
      %1501 = vmatpush2.bf16.msra.mxu0 0
      %1502 = vmatprep.subr.bf16.mxu0 0
      %1503 = vmatpush2.bf16.msra.mxu0 0
      %1504 = vmatprep.mubr.bf16.mxu0 0
      %1505 = vmatmul.mubr.bf16.gmra.mxu0 %v1386
      %v1506 = vpop.f32.mrf.mxu0
      %v1507 = vadd.f32 0.0, %v1506
      %v1508 = vpop.f32.mrf.mxu0
      %v1509 = vadd.f32 0.0, %v1508
      %v1510 = vpop.f32.mrf.mxu0
      %v1511 = vpop.f32.mrf.mxu0
      %1512 = vdwg.mxu0
      %1513 = vmatprep.subr.bf16.mxu0 0
      %1514 = vmatpush1.bf16.msra.mxu0 0
      %1515 = vmatprep.subr.bf16.mxu0 0
      %1516 = vmatpush1.bf16.msra.mxu0 0
      %1517 = vmatprep.subr.bf16.mxu0 0
      %1518 = vmatpush1.bf16.msra.mxu0 0
      %1519 = vmatprep.subr.bf16.mxu0 0
      %1520 = vmatpush1.bf16.msra.mxu0 0
      %1521 = vmatprep.subr.bf16.mxu0 0
      %1522 = vmatpush1.bf16.msra.mxu0 0
      %1523 = vmatprep.subr.bf16.mxu0 0
      %1524 = vmatpush1.bf16.msra.mxu0 0
      %1525 = vmatprep.subr.bf16.mxu0 0
      %1526 = vmatpush1.bf16.msra.mxu0 0
      %1527 = vmatprep.subr.bf16.mxu0 %v1388
      %1528 = vmatpush1.bf16.msra.mxu0 %v981
      %1529 = vmatprep.subr.bf16.mxu0 0
      %1530 = vmatpush2.bf16.msra.mxu0 0
      %1531 = vmatprep.subr.bf16.mxu0 0
      %1532 = vmatpush2.bf16.msra.mxu0 0
      %1533 = vmatprep.subr.bf16.mxu0 0
      %1534 = vmatpush2.bf16.msra.mxu0 0
      %1535 = vmatprep.subr.bf16.mxu0 0
      %1536 = vmatpush2.bf16.msra.mxu0 0
      %1537 = vmatprep.subr.bf16.mxu0 0
      %1538 = vmatpush2.bf16.msra.mxu0 0
      %1539 = vmatprep.subr.bf16.mxu0 0
      %1540 = vmatpush2.bf16.msra.mxu0 0
      %1541 = vmatprep.subr.bf16.mxu0 0
      %1542 = vmatpush2.bf16.msra.mxu0 0
      %1543 = vmatprep.subr.bf16.mxu0 0
      %1544 = vmatpush2.bf16.msra.mxu0 0
      %1545 = vmatprep.mubr.bf16.mxu0 0
      %1546 = vmatmul.mubr.bf16.gmra.mxu0 %v1386
      %v1547 = vpop.f32.mrf.mxu0
      %v1548 = vadd.f32 0.0, %v1547
      %v1549 = vpop.f32.mrf.mxu0
      %v1550 = vadd.f32 0.0, %v1549
      %v1551 = vpop.f32.mrf.mxu0
      %v1552 = vpop.f32.mrf.mxu0
      %1553 = vdwg.mxu0
      %v1554 = vadd.f32 %v1375, %v1425
      %v1555 = vadd.f32 %v1376, %v1427
      %v1556 = vadd.f32 %v1377, %v1466
      %v1557 = vadd.f32 %v1378, %v1468
      %v1558 = vadd.f32 %v1379, %v1507
      %v1559 = vadd.f32 %v1380, %v1509
      %v1560 = vadd.f32 %v1381, %v1548
      %v1561 = vadd.f32 %v1382, %v1550
      %1562 = vrot.lane.b32.xlu0 %v320, 126
      %v1563 = vpop.permute.xlu0 %1562
      %1564 = vrot.lane.b32.xlu0 %v321, 126
      %v1565 = vpop.permute.xlu0 %1564
      %1566 = vrot.lane.b32.xlu0 %v322, 126
      %v1567 = vpop.permute.xlu0 %1566
      %1568 = vrot.lane.b32.xlu0 %v323, 126
      %v1569 = vpop.permute.xlu0 %1568
      %1570 = vrot.lane.b32.xlu0 %v324, 126
      %v1571 = vpop.permute.xlu0 %1570
      %1572 = vrot.lane.b32.xlu0 %v325, 126
      %v1573 = vpop.permute.xlu0 %1572
      %1574 = vrot.lane.b32.xlu0 %v326, 126
      %v1575 = vpop.permute.xlu0 %1574
      %1576 = vrot.lane.b32.xlu0 %v327, 126
      %v1577 = vpop.permute.xlu0 %1576
      %1578 = vrot.lane.b32.xlu0 %v307, 126
      %v1579 = vpop.permute.xlu0 %1578
      %vm1580 = vcmask 1031168
      %v1581 = vsel %vm1580, %v1563, %v1565
      %v1582 = vsel %vm1580, %v1565, %v1567
      %v1583 = vsel %vm1580, %v1567, %v1569
      %v1584 = vsel %vm1580, %v1569, %v1571
      %v1585 = vsel %vm1580, %v1571, %v1573
      %v1586 = vsel %vm1580, %v1573, %v1575
      %v1587 = vsel %vm1580, %v1575, %v1577
      %v1588 = vsel %vm1580, %v1577, %v1579
      %vm1589 = vcmask 1031168
      %v1591 = vsel %vm1589, %v1579, 0
      %s1592 = scalar_lea.vmem %s2, 24
      %v1593 = vld [vmem:[%s1592] sm:$0xf]
      %v1595 = vsel %vm359, %v1593, 0
      %v1598 = vsel %vm363, %v1581, 0
      %v1601 = vsel %vm363, %v1582, 0
      %v1604 = vsel %vm363, %v1583, 0
      %v1607 = vsel %vm363, %v1584, 0
      %v1610 = vsel %vm363, %v1585, 0
      %v1613 = vsel %vm363, %v1586, 0
      %v1616 = vsel %vm363, %v1587, 0
      %v1619 = vsel %vm363, %v1588, 0
      %1621 = vmatprep.subr.bf16.mxu0 0
      %1622 = vmatpush1.bf16.msra.mxu0 0
      %1623 = vmatprep.subr.bf16.mxu0 0
      %1624 = vmatpush1.bf16.msra.mxu0 0
      %1625 = vmatprep.subr.bf16.mxu0 0
      %1626 = vmatpush1.bf16.msra.mxu0 0
      %1627 = vmatprep.subr.bf16.mxu0 0
      %1628 = vmatpush1.bf16.msra.mxu0 0
      %1629 = vmatprep.subr.bf16.mxu0 0
      %1630 = vmatpush1.bf16.msra.mxu0 0
      %1631 = vmatprep.subr.bf16.mxu0 0
      %1632 = vmatpush1.bf16.msra.mxu0 0
      %1633 = vmatprep.subr.bf16.mxu0 0
      %1634 = vmatpush1.bf16.msra.mxu0 0
      %1635 = vmatprep.subr.bf16.mxu0 %v1601
      %1636 = vmatpush1.bf16.msra.mxu0 %v1598
      %1637 = vmatprep.subr.bf16.mxu0 0
      %1638 = vmatpush2.bf16.msra.mxu0 0
      %1639 = vmatprep.subr.bf16.mxu0 0
      %1640 = vmatpush2.bf16.msra.mxu0 0
      %1641 = vmatprep.subr.bf16.mxu0 0
      %1642 = vmatpush2.bf16.msra.mxu0 0
      %1643 = vmatprep.subr.bf16.mxu0 0
      %1644 = vmatpush2.bf16.msra.mxu0 0
      %1645 = vmatprep.subr.bf16.mxu0 0
      %1646 = vmatpush2.bf16.msra.mxu0 0
      %1647 = vmatprep.subr.bf16.mxu0 0
      %1648 = vmatpush2.bf16.msra.mxu0 0
      %1649 = vmatprep.subr.bf16.mxu0 0
      %1650 = vmatpush2.bf16.msra.mxu0 0
      %1651 = vmatprep.subr.bf16.mxu0 0
      %1652 = vmatpush2.bf16.msra.mxu0 0
      %1653 = vmatprep.mubr.bf16.mxu0 0
      %1654 = vmatmul.mubr.bf16.gmra.mxu0 %v1595
      %v1655 = vpop.f32.mrf.mxu0
      %v1656 = vadd.f32 0.0, %v1655
      %v1657 = vpop.f32.mrf.mxu0
      %v1658 = vadd.f32 0.0, %v1657
      %v1659 = vpop.f32.mrf.mxu0
      %v1660 = vpop.f32.mrf.mxu0
      %1661 = vdwg.mxu0
      %1662 = vmatprep.subr.bf16.mxu0 0
      %1663 = vmatpush1.bf16.msra.mxu0 0
      %1664 = vmatprep.subr.bf16.mxu0 0
      %1665 = vmatpush1.bf16.msra.mxu0 0
      %1666 = vmatprep.subr.bf16.mxu0 0
      %1667 = vmatpush1.bf16.msra.mxu0 0
      %1668 = vmatprep.subr.bf16.mxu0 0
      %1669 = vmatpush1.bf16.msra.mxu0 0
      %1670 = vmatprep.subr.bf16.mxu0 0
      %1671 = vmatpush1.bf16.msra.mxu0 0
      %1672 = vmatprep.subr.bf16.mxu0 0
      %1673 = vmatpush1.bf16.msra.mxu0 0
      %1674 = vmatprep.subr.bf16.mxu0 0
      %1675 = vmatpush1.bf16.msra.mxu0 0
      %1676 = vmatprep.subr.bf16.mxu0 %v1607
      %1677 = vmatpush1.bf16.msra.mxu0 %v1604
      %1678 = vmatprep.subr.bf16.mxu0 0
      %1679 = vmatpush2.bf16.msra.mxu0 0
      %1680 = vmatprep.subr.bf16.mxu0 0
      %1681 = vmatpush2.bf16.msra.mxu0 0
      %1682 = vmatprep.subr.bf16.mxu0 0
      %1683 = vmatpush2.bf16.msra.mxu0 0
      %1684 = vmatprep.subr.bf16.mxu0 0
      %1685 = vmatpush2.bf16.msra.mxu0 0
      %1686 = vmatprep.subr.bf16.mxu0 0
      %1687 = vmatpush2.bf16.msra.mxu0 0
      %1688 = vmatprep.subr.bf16.mxu0 0
      %1689 = vmatpush2.bf16.msra.mxu0 0
      %1690 = vmatprep.subr.bf16.mxu0 0
      %1691 = vmatpush2.bf16.msra.mxu0 0
      %1692 = vmatprep.subr.bf16.mxu0 0
      %1693 = vmatpush2.bf16.msra.mxu0 0
      %1694 = vmatprep.mubr.bf16.mxu0 0
      %1695 = vmatmul.mubr.bf16.gmra.mxu0 %v1595
      %v1696 = vpop.f32.mrf.mxu0
      %v1697 = vadd.f32 0.0, %v1696
      %v1698 = vpop.f32.mrf.mxu0
      %v1699 = vadd.f32 0.0, %v1698
      %v1700 = vpop.f32.mrf.mxu0
      %v1701 = vpop.f32.mrf.mxu0
      %1702 = vdwg.mxu0
      %1703 = vmatprep.subr.bf16.mxu0 0
      %1704 = vmatpush1.bf16.msra.mxu0 0
      %1705 = vmatprep.subr.bf16.mxu0 0
      %1706 = vmatpush1.bf16.msra.mxu0 0
      %1707 = vmatprep.subr.bf16.mxu0 0
      %1708 = vmatpush1.bf16.msra.mxu0 0
      %1709 = vmatprep.subr.bf16.mxu0 0
      %1710 = vmatpush1.bf16.msra.mxu0 0
      %1711 = vmatprep.subr.bf16.mxu0 0
      %1712 = vmatpush1.bf16.msra.mxu0 0
      %1713 = vmatprep.subr.bf16.mxu0 0
      %1714 = vmatpush1.bf16.msra.mxu0 0
      %1715 = vmatprep.subr.bf16.mxu0 0
      %1716 = vmatpush1.bf16.msra.mxu0 0
      %1717 = vmatprep.subr.bf16.mxu0 %v1613
      %1718 = vmatpush1.bf16.msra.mxu0 %v1610
      %1719 = vmatprep.subr.bf16.mxu0 0
      %1720 = vmatpush2.bf16.msra.mxu0 0
      %1721 = vmatprep.subr.bf16.mxu0 0
      %1722 = vmatpush2.bf16.msra.mxu0 0
      %1723 = vmatprep.subr.bf16.mxu0 0
      %1724 = vmatpush2.bf16.msra.mxu0 0
      %1725 = vmatprep.subr.bf16.mxu0 0
      %1726 = vmatpush2.bf16.msra.mxu0 0
      %1727 = vmatprep.subr.bf16.mxu0 0
      %1728 = vmatpush2.bf16.msra.mxu0 0
      %1729 = vmatprep.subr.bf16.mxu0 0
      %1730 = vmatpush2.bf16.msra.mxu0 0
      %1731 = vmatprep.subr.bf16.mxu0 0
      %1732 = vmatpush2.bf16.msra.mxu0 0
      %1733 = vmatprep.subr.bf16.mxu0 0
      %1734 = vmatpush2.bf16.msra.mxu0 0
      %1735 = vmatprep.mubr.bf16.mxu0 0
      %1736 = vmatmul.mubr.bf16.gmra.mxu0 %v1595
      %v1737 = vpop.f32.mrf.mxu0
      %v1738 = vadd.f32 0.0, %v1737
      %v1739 = vpop.f32.mrf.mxu0
      %v1740 = vadd.f32 0.0, %v1739
      %v1741 = vpop.f32.mrf.mxu0
      %v1742 = vpop.f32.mrf.mxu0
      %1743 = vdwg.mxu0
      %1744 = vmatprep.subr.bf16.mxu0 0
      %1745 = vmatpush1.bf16.msra.mxu0 0
      %1746 = vmatprep.subr.bf16.mxu0 0
      %1747 = vmatpush1.bf16.msra.mxu0 0
      %1748 = vmatprep.subr.bf16.mxu0 0
      %1749 = vmatpush1.bf16.msra.mxu0 0
      %1750 = vmatprep.subr.bf16.mxu0 0
      %1751 = vmatpush1.bf16.msra.mxu0 0
      %1752 = vmatprep.subr.bf16.mxu0 0
      %1753 = vmatpush1.bf16.msra.mxu0 0
      %1754 = vmatprep.subr.bf16.mxu0 0
      %1755 = vmatpush1.bf16.msra.mxu0 0
      %1756 = vmatprep.subr.bf16.mxu0 0
      %1757 = vmatpush1.bf16.msra.mxu0 0
      %1758 = vmatprep.subr.bf16.mxu0 %v1619
      %1759 = vmatpush1.bf16.msra.mxu0 %v1616
      %1760 = vmatprep.subr.bf16.mxu0 0
      %1761 = vmatpush2.bf16.msra.mxu0 0
      %1762 = vmatprep.subr.bf16.mxu0 0
      %1763 = vmatpush2.bf16.msra.mxu0 0
      %1764 = vmatprep.subr.bf16.mxu0 0
      %1765 = vmatpush2.bf16.msra.mxu0 0
      %1766 = vmatprep.subr.bf16.mxu0 0
      %1767 = vmatpush2.bf16.msra.mxu0 0
      %1768 = vmatprep.subr.bf16.mxu0 0
      %1769 = vmatpush2.bf16.msra.mxu0 0
      %1770 = vmatprep.subr.bf16.mxu0 0
      %1771 = vmatpush2.bf16.msra.mxu0 0
      %1772 = vmatprep.subr.bf16.mxu0 0
      %1773 = vmatpush2.bf16.msra.mxu0 0
      %1774 = vmatprep.subr.bf16.mxu0 0
      %1775 = vmatpush2.bf16.msra.mxu0 0
      %1776 = vmatprep.mubr.bf16.mxu0 0
      %1777 = vmatmul.mubr.bf16.gmra.mxu0 %v1595
      %v1778 = vpop.f32.mrf.mxu0
      %v1779 = vadd.f32 0.0, %v1778
      %v1780 = vpop.f32.mrf.mxu0
      %v1781 = vadd.f32 0.0, %v1780
      %v1782 = vpop.f32.mrf.mxu0
      %v1783 = vpop.f32.mrf.mxu0
      %1784 = vdwg.mxu0
      %v1785 = vadd.f32 %v1554, %v1656
      %v1786 = vadd.f32 %v1555, %v1658
      %v1787 = vadd.f32 %v1556, %v1697
      %v1788 = vadd.f32 %v1557, %v1699
      %v1789 = vadd.f32 %v1558, %v1738
      %v1790 = vadd.f32 %v1559, %v1740
      %v1791 = vadd.f32 %v1560, %v1779
      %v1792 = vadd.f32 %v1561, %v1781
      %s1793 = scalar_lea.vmem %s2, 28
      %v1794 = vld [vmem:[%s1793] sm:$0xf]
      %1796 = vrot.lane.b32.xlu0 %v1581, 64
      %v1797 = vpop.permute.xlu0 %1796
      %1798 = vrot.lane.b32.xlu0 %v1582, 64
      %v1799 = vpop.permute.xlu0 %1798
      %1800 = vrot.lane.b32.xlu0 %v1583, 64
      %v1801 = vpop.permute.xlu0 %1800
      %1802 = vrot.lane.b32.xlu0 %v1584, 64
      %v1803 = vpop.permute.xlu0 %1802
      %1804 = vrot.lane.b32.xlu0 %v1585, 64
      %v1805 = vpop.permute.xlu0 %1804
      %1806 = vrot.lane.b32.xlu0 %v1586, 64
      %v1807 = vpop.permute.xlu0 %1806
      %1808 = vrot.lane.b32.xlu0 %v1587, 64
      %v1809 = vpop.permute.xlu0 %1808
      %1810 = vrot.lane.b32.xlu0 %v1588, 64
      %v1811 = vpop.permute.xlu0 %1810
      %1812 = vrot.lane.b32.xlu0 %v1591, 64
      %v1813 = vpop.permute.xlu0 %1812
      %v1814 = vsel %vm350, %v1797, %v1799
      %v1815 = vsel %vm350, %v1799, %v1801
      %v1816 = vsel %vm350, %v1801, %v1803
      %v1817 = vsel %vm350, %v1803, %v1805
      %v1818 = vsel %vm350, %v1805, %v1807
      %v1819 = vsel %vm350, %v1807, %v1809
      %v1820 = vsel %vm350, %v1809, %v1811
      %v1821 = vsel %vm350, %v1811, %v1813
      %v1823 = vsel %vm359, %v1794, 0
      %v1826 = vsel %vm363, %v1814, 0
      %v1829 = vsel %vm363, %v1815, 0
      %v1832 = vsel %vm363, %v1816, 0
      %v1835 = vsel %vm363, %v1817, 0
      %v1838 = vsel %vm363, %v1818, 0
      %v1841 = vsel %vm363, %v1819, 0
      %v1844 = vsel %vm363, %v1820, 0
      %v1847 = vsel %vm363, %v1821, 0
      %1849 = vmatprep.subr.bf16.mxu0 0
      %1850 = vmatpush1.bf16.msra.mxu0 0
      %1851 = vmatprep.subr.bf16.mxu0 0
      %1852 = vmatpush1.bf16.msra.mxu0 0
      %1853 = vmatprep.subr.bf16.mxu0 0
      %1854 = vmatpush1.bf16.msra.mxu0 0
      %1855 = vmatprep.subr.bf16.mxu0 0
      %1856 = vmatpush1.bf16.msra.mxu0 0
      %1857 = vmatprep.subr.bf16.mxu0 0
      %1858 = vmatpush1.bf16.msra.mxu0 0
      %1859 = vmatprep.subr.bf16.mxu0 0
      %1860 = vmatpush1.bf16.msra.mxu0 0
      %1861 = vmatprep.subr.bf16.mxu0 0
      %1862 = vmatpush1.bf16.msra.mxu0 0
      %1863 = vmatprep.subr.bf16.mxu0 %v1829
      %1864 = vmatpush1.bf16.msra.mxu0 %v1826
      %1865 = vmatprep.subr.bf16.mxu0 0
      %1866 = vmatpush2.bf16.msra.mxu0 0
      %1867 = vmatprep.subr.bf16.mxu0 0
      %1868 = vmatpush2.bf16.msra.mxu0 0
      %1869 = vmatprep.subr.bf16.mxu0 0
      %1870 = vmatpush2.bf16.msra.mxu0 0
      %1871 = vmatprep.subr.bf16.mxu0 0
      %1872 = vmatpush2.bf16.msra.mxu0 0
      %1873 = vmatprep.subr.bf16.mxu0 0
      %1874 = vmatpush2.bf16.msra.mxu0 0
      %1875 = vmatprep.subr.bf16.mxu0 0
      %1876 = vmatpush2.bf16.msra.mxu0 0
      %1877 = vmatprep.subr.bf16.mxu0 0
      %1878 = vmatpush2.bf16.msra.mxu0 0
      %1879 = vmatprep.subr.bf16.mxu0 0
      %1880 = vmatpush2.bf16.msra.mxu0 0
      %1881 = vmatprep.mubr.bf16.mxu0 0
      %1882 = vmatmul.mubr.bf16.gmra.mxu0 %v1823
      %v1883 = vpop.f32.mrf.mxu0
      %v1884 = vadd.f32 0.0, %v1883
      %v1885 = vpop.f32.mrf.mxu0
      %v1886 = vadd.f32 0.0, %v1885
      %v1887 = vpop.f32.mrf.mxu0
      %v1888 = vpop.f32.mrf.mxu0
      %1889 = vdwg.mxu0
      %1890 = vmatprep.subr.bf16.mxu0 0
      %1891 = vmatpush1.bf16.msra.mxu0 0
      %1892 = vmatprep.subr.bf16.mxu0 0
      %1893 = vmatpush1.bf16.msra.mxu0 0
      %1894 = vmatprep.subr.bf16.mxu0 0
      %1895 = vmatpush1.bf16.msra.mxu0 0
      %1896 = vmatprep.subr.bf16.mxu0 0
      %1897 = vmatpush1.bf16.msra.mxu0 0
      %1898 = vmatprep.subr.bf16.mxu0 0
      %1899 = vmatpush1.bf16.msra.mxu0 0
      %1900 = vmatprep.subr.bf16.mxu0 0
      %1901 = vmatpush1.bf16.msra.mxu0 0
      %1902 = vmatprep.subr.bf16.mxu0 0
      %1903 = vmatpush1.bf16.msra.mxu0 0
      %1904 = vmatprep.subr.bf16.mxu0 %v1835
      %1905 = vmatpush1.bf16.msra.mxu0 %v1832
      %1906 = vmatprep.subr.bf16.mxu0 0
      %1907 = vmatpush2.bf16.msra.mxu0 0
      %1908 = vmatprep.subr.bf16.mxu0 0
      %1909 = vmatpush2.bf16.msra.mxu0 0
      %1910 = vmatprep.subr.bf16.mxu0 0
      %1911 = vmatpush2.bf16.msra.mxu0 0
      %1912 = vmatprep.subr.bf16.mxu0 0
      %1913 = vmatpush2.bf16.msra.mxu0 0
      %1914 = vmatprep.subr.bf16.mxu0 0
      %1915 = vmatpush2.bf16.msra.mxu0 0
      %1916 = vmatprep.subr.bf16.mxu0 0
      %1917 = vmatpush2.bf16.msra.mxu0 0
      %1918 = vmatprep.subr.bf16.mxu0 0
      %1919 = vmatpush2.bf16.msra.mxu0 0
      %1920 = vmatprep.subr.bf16.mxu0 0
      %1921 = vmatpush2.bf16.msra.mxu0 0
      %1922 = vmatprep.mubr.bf16.mxu0 0
      %1923 = vmatmul.mubr.bf16.gmra.mxu0 %v1823
      %v1924 = vpop.f32.mrf.mxu0
      %v1925 = vadd.f32 0.0, %v1924
      %v1926 = vpop.f32.mrf.mxu0
      %v1927 = vadd.f32 0.0, %v1926
      %v1928 = vpop.f32.mrf.mxu0
      %v1929 = vpop.f32.mrf.mxu0
      %1930 = vdwg.mxu0
      %1931 = vmatprep.subr.bf16.mxu0 0
      %1932 = vmatpush1.bf16.msra.mxu0 0
      %1933 = vmatprep.subr.bf16.mxu0 0
      %1934 = vmatpush1.bf16.msra.mxu0 0
      %1935 = vmatprep.subr.bf16.mxu0 0
      %1936 = vmatpush1.bf16.msra.mxu0 0
      %1937 = vmatprep.subr.bf16.mxu0 0
      %1938 = vmatpush1.bf16.msra.mxu0 0
      %1939 = vmatprep.subr.bf16.mxu0 0
      %1940 = vmatpush1.bf16.msra.mxu0 0
      %1941 = vmatprep.subr.bf16.mxu0 0
      %1942 = vmatpush1.bf16.msra.mxu0 0
      %1943 = vmatprep.subr.bf16.mxu0 0
      %1944 = vmatpush1.bf16.msra.mxu0 0
      %1945 = vmatprep.subr.bf16.mxu0 %v1841
      %1946 = vmatpush1.bf16.msra.mxu0 %v1838
      %1947 = vmatprep.subr.bf16.mxu0 0
      %1948 = vmatpush2.bf16.msra.mxu0 0
      %1949 = vmatprep.subr.bf16.mxu0 0
      %1950 = vmatpush2.bf16.msra.mxu0 0
      %1951 = vmatprep.subr.bf16.mxu0 0
      %1952 = vmatpush2.bf16.msra.mxu0 0
      %1953 = vmatprep.subr.bf16.mxu0 0
      %1954 = vmatpush2.bf16.msra.mxu0 0
      %1955 = vmatprep.subr.bf16.mxu0 0
      %1956 = vmatpush2.bf16.msra.mxu0 0
      %1957 = vmatprep.subr.bf16.mxu0 0
      %1958 = vmatpush2.bf16.msra.mxu0 0
      %1959 = vmatprep.subr.bf16.mxu0 0
      %1960 = vmatpush2.bf16.msra.mxu0 0
      %1961 = vmatprep.subr.bf16.mxu0 0
      %1962 = vmatpush2.bf16.msra.mxu0 0
      %1963 = vmatprep.mubr.bf16.mxu0 0
      %1964 = vmatmul.mubr.bf16.gmra.mxu0 %v1823
      %v1965 = vpop.f32.mrf.mxu0
      %v1966 = vadd.f32 0.0, %v1965
      %v1967 = vpop.f32.mrf.mxu0
      %v1968 = vadd.f32 0.0, %v1967
      %v1969 = vpop.f32.mrf.mxu0
      %v1970 = vpop.f32.mrf.mxu0
      %1971 = vdwg.mxu0
      %1972 = vmatprep.subr.bf16.mxu0 0
      %1973 = vmatpush1.bf16.msra.mxu0 0
      %1974 = vmatprep.subr.bf16.mxu0 0
      %1975 = vmatpush1.bf16.msra.mxu0 0
      %1976 = vmatprep.subr.bf16.mxu0 0
      %1977 = vmatpush1.bf16.msra.mxu0 0
      %1978 = vmatprep.subr.bf16.mxu0 0
      %1979 = vmatpush1.bf16.msra.mxu0 0
      %1980 = vmatprep.subr.bf16.mxu0 0
      %1981 = vmatpush1.bf16.msra.mxu0 0
      %1982 = vmatprep.subr.bf16.mxu0 0
      %1983 = vmatpush1.bf16.msra.mxu0 0
      %1984 = vmatprep.subr.bf16.mxu0 0
      %1985 = vmatpush1.bf16.msra.mxu0 0
      %1986 = vmatprep.subr.bf16.mxu0 %v1847
      %1987 = vmatpush1.bf16.msra.mxu0 %v1844
      %1988 = vmatprep.subr.bf16.mxu0 0
      %1989 = vmatpush2.bf16.msra.mxu0 0
      %1990 = vmatprep.subr.bf16.mxu0 0
      %1991 = vmatpush2.bf16.msra.mxu0 0
      %1992 = vmatprep.subr.bf16.mxu0 0
      %1993 = vmatpush2.bf16.msra.mxu0 0
      %1994 = vmatprep.subr.bf16.mxu0 0
      %1995 = vmatpush2.bf16.msra.mxu0 0
      %1996 = vmatprep.subr.bf16.mxu0 0
      %1997 = vmatpush2.bf16.msra.mxu0 0
      %1998 = vmatprep.subr.bf16.mxu0 0
      %1999 = vmatpush2.bf16.msra.mxu0 0
      %2000 = vmatprep.subr.bf16.mxu0 0
      %2001 = vmatpush2.bf16.msra.mxu0 0
      %2002 = vmatprep.subr.bf16.mxu0 0
      %2003 = vmatpush2.bf16.msra.mxu0 0
      %2004 = vmatprep.mubr.bf16.mxu0 0
      %2005 = vmatmul.mubr.bf16.gmra.mxu0 %v1823
      %v2006 = vpop.f32.mrf.mxu0
      %v2007 = vadd.f32 0.0, %v2006
      %v2008 = vpop.f32.mrf.mxu0
      %v2009 = vadd.f32 0.0, %v2008
      %v2010 = vpop.f32.mrf.mxu0
      %v2011 = vpop.f32.mrf.mxu0
      %2012 = vdwg.mxu0
      %v2013 = vadd.f32 %v1785, %v1884
      %v2014 = vadd.f32 %v1786, %v1886
      %v2015 = vadd.f32 %v1787, %v1925
      %v2016 = vadd.f32 %v1788, %v1927
      %v2017 = vadd.f32 %v1789, %v1966
      %v2018 = vadd.f32 %v1790, %v1968
      %v2019 = vadd.f32 %v1791, %v2007
      %v2020 = vadd.f32 %v1792, %v2009
      %s2021 = scalar_lea.vmem %s2, 32
      %v2022 = vld [vmem:[%s2021] sm:$0xf]
      %v2024 = vsel %vm359, %v2022, 0
      %v2026 = vsel %vm363, %v1591, 0
      %2028 = vmatprep.subr.bf16.mxu0 0
      %2029 = vmatpush1.bf16.msra.mxu0 0
      %2030 = vmatprep.subr.bf16.mxu0 0
      %2031 = vmatpush1.bf16.msra.mxu0 0
      %2032 = vmatprep.subr.bf16.mxu0 0
      %2033 = vmatpush1.bf16.msra.mxu0 0
      %2034 = vmatprep.subr.bf16.mxu0 0
      %2035 = vmatpush1.bf16.msra.mxu0 0
      %2036 = vmatprep.subr.bf16.mxu0 0
      %2037 = vmatpush1.bf16.msra.mxu0 0
      %2038 = vmatprep.subr.bf16.mxu0 0
      %2039 = vmatpush1.bf16.msra.mxu0 0
      %2040 = vmatprep.subr.bf16.mxu0 0
      %2041 = vmatpush1.bf16.msra.mxu0 0
      %2042 = vmatprep.subr.bf16.mxu0 %v1604
      %2043 = vmatpush1.bf16.msra.mxu0 %v1601
      %2044 = vmatprep.subr.bf16.mxu0 0
      %2045 = vmatpush2.bf16.msra.mxu0 0
      %2046 = vmatprep.subr.bf16.mxu0 0
      %2047 = vmatpush2.bf16.msra.mxu0 0
      %2048 = vmatprep.subr.bf16.mxu0 0
      %2049 = vmatpush2.bf16.msra.mxu0 0
      %2050 = vmatprep.subr.bf16.mxu0 0
      %2051 = vmatpush2.bf16.msra.mxu0 0
      %2052 = vmatprep.subr.bf16.mxu0 0
      %2053 = vmatpush2.bf16.msra.mxu0 0
      %2054 = vmatprep.subr.bf16.mxu0 0
      %2055 = vmatpush2.bf16.msra.mxu0 0
      %2056 = vmatprep.subr.bf16.mxu0 0
      %2057 = vmatpush2.bf16.msra.mxu0 0
      %2058 = vmatprep.subr.bf16.mxu0 0
      %2059 = vmatpush2.bf16.msra.mxu0 0
      %2060 = vmatprep.mubr.bf16.mxu0 0
      %2061 = vmatmul.mubr.bf16.gmra.mxu0 %v2024
      %v2062 = vpop.f32.mrf.mxu0
      %v2063 = vadd.f32 0.0, %v2062
      %v2064 = vpop.f32.mrf.mxu0
      %v2065 = vadd.f32 0.0, %v2064
      %v2066 = vpop.f32.mrf.mxu0
      %v2067 = vpop.f32.mrf.mxu0
      %2068 = vdwg.mxu0
      %2069 = vmatprep.subr.bf16.mxu0 0
      %2070 = vmatpush1.bf16.msra.mxu0 0
      %2071 = vmatprep.subr.bf16.mxu0 0
      %2072 = vmatpush1.bf16.msra.mxu0 0
      %2073 = vmatprep.subr.bf16.mxu0 0
      %2074 = vmatpush1.bf16.msra.mxu0 0
      %2075 = vmatprep.subr.bf16.mxu0 0
      %2076 = vmatpush1.bf16.msra.mxu0 0
      %2077 = vmatprep.subr.bf16.mxu0 0
      %2078 = vmatpush1.bf16.msra.mxu0 0
      %2079 = vmatprep.subr.bf16.mxu0 0
      %2080 = vmatpush1.bf16.msra.mxu0 0
      %2081 = vmatprep.subr.bf16.mxu0 0
      %2082 = vmatpush1.bf16.msra.mxu0 0
      %2083 = vmatprep.subr.bf16.mxu0 %v1610
      %2084 = vmatpush1.bf16.msra.mxu0 %v1607
      %2085 = vmatprep.subr.bf16.mxu0 0
      %2086 = vmatpush2.bf16.msra.mxu0 0
      %2087 = vmatprep.subr.bf16.mxu0 0
      %2088 = vmatpush2.bf16.msra.mxu0 0
      %2089 = vmatprep.subr.bf16.mxu0 0
      %2090 = vmatpush2.bf16.msra.mxu0 0
      %2091 = vmatprep.subr.bf16.mxu0 0
      %2092 = vmatpush2.bf16.msra.mxu0 0
      %2093 = vmatprep.subr.bf16.mxu0 0
      %2094 = vmatpush2.bf16.msra.mxu0 0
      %2095 = vmatprep.subr.bf16.mxu0 0
      %2096 = vmatpush2.bf16.msra.mxu0 0
      %2097 = vmatprep.subr.bf16.mxu0 0
      %2098 = vmatpush2.bf16.msra.mxu0 0
      %2099 = vmatprep.subr.bf16.mxu0 0
      %2100 = vmatpush2.bf16.msra.mxu0 0
      %2101 = vmatprep.mubr.bf16.mxu0 0
      %2102 = vmatmul.mubr.bf16.gmra.mxu0 %v2024
      %v2103 = vpop.f32.mrf.mxu0
      %v2104 = vadd.f32 0.0, %v2103
      %v2105 = vpop.f32.mrf.mxu0
      %v2106 = vadd.f32 0.0, %v2105
      %v2107 = vpop.f32.mrf.mxu0
      %v2108 = vpop.f32.mrf.mxu0
      %2109 = vdwg.mxu0
      %2110 = vmatprep.subr.bf16.mxu0 0
      %2111 = vmatpush1.bf16.msra.mxu0 0
      %2112 = vmatprep.subr.bf16.mxu0 0
      %2113 = vmatpush1.bf16.msra.mxu0 0
      %2114 = vmatprep.subr.bf16.mxu0 0
      %2115 = vmatpush1.bf16.msra.mxu0 0
      %2116 = vmatprep.subr.bf16.mxu0 0
      %2117 = vmatpush1.bf16.msra.mxu0 0
      %2118 = vmatprep.subr.bf16.mxu0 0
      %2119 = vmatpush1.bf16.msra.mxu0 0
      %2120 = vmatprep.subr.bf16.mxu0 0
      %2121 = vmatpush1.bf16.msra.mxu0 0
      %2122 = vmatprep.subr.bf16.mxu0 0
      %2123 = vmatpush1.bf16.msra.mxu0 0
      %2124 = vmatprep.subr.bf16.mxu0 %v1616
      %2125 = vmatpush1.bf16.msra.mxu0 %v1613
      %2126 = vmatprep.subr.bf16.mxu0 0
      %2127 = vmatpush2.bf16.msra.mxu0 0
      %2128 = vmatprep.subr.bf16.mxu0 0
      %2129 = vmatpush2.bf16.msra.mxu0 0
      %2130 = vmatprep.subr.bf16.mxu0 0
      %2131 = vmatpush2.bf16.msra.mxu0 0
      %2132 = vmatprep.subr.bf16.mxu0 0
      %2133 = vmatpush2.bf16.msra.mxu0 0
      %2134 = vmatprep.subr.bf16.mxu0 0
      %2135 = vmatpush2.bf16.msra.mxu0 0
      %2136 = vmatprep.subr.bf16.mxu0 0
      %2137 = vmatpush2.bf16.msra.mxu0 0
      %2138 = vmatprep.subr.bf16.mxu0 0
      %2139 = vmatpush2.bf16.msra.mxu0 0
      %2140 = vmatprep.subr.bf16.mxu0 0
      %2141 = vmatpush2.bf16.msra.mxu0 0
      %2142 = vmatprep.mubr.bf16.mxu0 0
      %2143 = vmatmul.mubr.bf16.gmra.mxu0 %v2024
      %v2144 = vpop.f32.mrf.mxu0
      %v2145 = vadd.f32 0.0, %v2144
      %v2146 = vpop.f32.mrf.mxu0
      %v2147 = vadd.f32 0.0, %v2146
      %v2148 = vpop.f32.mrf.mxu0
      %v2149 = vpop.f32.mrf.mxu0
      %2150 = vdwg.mxu0
      %2151 = vmatprep.subr.bf16.mxu0 0
      %2152 = vmatpush1.bf16.msra.mxu0 0
      %2153 = vmatprep.subr.bf16.mxu0 0
      %2154 = vmatpush1.bf16.msra.mxu0 0
      %2155 = vmatprep.subr.bf16.mxu0 0
      %2156 = vmatpush1.bf16.msra.mxu0 0
      %2157 = vmatprep.subr.bf16.mxu0 0
      %2158 = vmatpush1.bf16.msra.mxu0 0
      %2159 = vmatprep.subr.bf16.mxu0 0
      %2160 = vmatpush1.bf16.msra.mxu0 0
      %2161 = vmatprep.subr.bf16.mxu0 0
      %2162 = vmatpush1.bf16.msra.mxu0 0
      %2163 = vmatprep.subr.bf16.mxu0 0
      %2164 = vmatpush1.bf16.msra.mxu0 0
      %2165 = vmatprep.subr.bf16.mxu0 %v2026
      %2166 = vmatpush1.bf16.msra.mxu0 %v1619
      %2167 = vmatprep.subr.bf16.mxu0 0
      %2168 = vmatpush2.bf16.msra.mxu0 0
      %2169 = vmatprep.subr.bf16.mxu0 0
      %2170 = vmatpush2.bf16.msra.mxu0 0
      %2171 = vmatprep.subr.bf16.mxu0 0
      %2172 = vmatpush2.bf16.msra.mxu0 0
      %2173 = vmatprep.subr.bf16.mxu0 0
      %2174 = vmatpush2.bf16.msra.mxu0 0
      %2175 = vmatprep.subr.bf16.mxu0 0
      %2176 = vmatpush2.bf16.msra.mxu0 0
      %2177 = vmatprep.subr.bf16.mxu0 0
      %2178 = vmatpush2.bf16.msra.mxu0 0
      %2179 = vmatprep.subr.bf16.mxu0 0
      %2180 = vmatpush2.bf16.msra.mxu0 0
      %2181 = vmatprep.subr.bf16.mxu0 0
      %2182 = vmatpush2.bf16.msra.mxu0 0
      %2183 = vmatprep.mubr.bf16.mxu0 0
      %2184 = vmatmul.mubr.bf16.gmra.mxu0 %v2024
      %v2185 = vpop.f32.mrf.mxu0
      %v2186 = vadd.f32 0.0, %v2185
      %v2187 = vpop.f32.mrf.mxu0
      %v2188 = vadd.f32 0.0, %v2187
      %v2189 = vpop.f32.mrf.mxu0
      %v2190 = vpop.f32.mrf.mxu0
      %2191 = vdwg.mxu0
      %v2192 = vadd.f32 %v2013, %v2063
      %v2193 = vadd.f32 %v2014, %v2065
      %v2194 = vadd.f32 %v2015, %v2104
      %v2195 = vadd.f32 %v2016, %v2106
      %v2196 = vadd.f32 %v2017, %v2145
      %v2197 = vadd.f32 %v2018, %v2147
      %v2198 = vadd.f32 %v2019, %v2186
      %v2199 = vadd.f32 %v2020, %v2188
      %v2200 = vld [vmem:[%s3] sm:$0xff]
      %2202 = vset.pattern.permute.xlu0 0
      %2203 = vperm.xlu0 %2202, %v2200
      %v2204 = vpop.permute.xlu0 %2203
      %v2206 = vadd.f32 %v2192, %v2204
      %v2207 = vadd.f32 %v2193, %v2204
      %v2208 = vadd.f32 %v2194, %v2204
      %v2209 = vadd.f32 %v2195, %v2204
      %v2210 = vadd.f32 %v2196, %v2204
      %v2211 = vadd.f32 %v2197, %v2204
      %v2212 = vadd.f32 %v2198, %v2204
      %v2213 = vadd.f32 %v2199, %v2204
      %2214 = vst [vmem:[%s300] sm:$0xff] %v2206
      %2215 = vst [vmem:[%s300 + $0x8] sm:$0xff] %v2207
      %2216 = vst [vmem:[%s300 + $0x10] sm:$0xff] %v2208
      %2217 = vst [vmem:[%s300 + $0x18] sm:$0xff] %v2209
      %2218 = vst [vmem:[%s300 + $0x20] sm:$0xff] %v2210
      %2219 = vst [vmem:[%s300 + $0x28] sm:$0xff] %v2211
      %2220 = vst [vmem:[%s300 + $0x30] sm:$0xff] %v2212
      %2221 = vst [vmem:[%s300 + $0x38] sm:$0xff] %v2213
      %s2222 = smul.u32 8, %s20
      %p2223 = scmp.lt.s32.totalorder %s19, 1
      %s2224 = scalar_select %p2223, %s19, 1
      %p2225 = scmp.lt.s32.totalorder %s2222, 7
      %s2226 = scalar_select %p2225, %s2222, 7
      %s2227 = smul.addr %s2224, 8
      %s2228 = sadd.s32 %s2226, %s2227
      %s2229 = smul.addr %s2228, 8
      %s2230 = scalar_lea.vmem %s4, %s2229
      // Predicated region
      $region37: #{meta_conv2d.1} parent=35 // pred_check
        %p2231 = pneg %p149
      $region38: #{meta_conv2d.1} parent=35 // pred_check_branch
        %2233 = sbr.rel (%p2231) target = $region40
      $region39: #{meta_conv2d.1} parent=35 // pred_region
        %s2234 = smul.u32 8, %s20
      $region40: #{meta_conv2d.1} parent=35 // pred_fallthru
        _
    $region36: #{meta_conv2d.1} parent=5 // pred_fallthru
      _
    %p2235 = scmp.le.s32.totalorder 2, %s10
    // Predicated region
    $region41: #{meta_conv2d.1} parent=5 // pred_check
      %p2236 = pneg %p2235
    $region42: #{meta_conv2d.1} parent=5 // pred_check_branch
      %2238 = sbr.rel (%p2236) target = $region44
    $region43: #{meta_conv2d.1} parent=5 // pred_region
      %s2239 = ssub.s32 %s10, 2
      // Predicated region
      $region45: #{meta_conv2d.1} parent=43 // pred_check
        %p2240 = pneg %p155
      $region46: #{meta_conv2d.1} parent=43 // pred_check_branch
        %2242 = sbr.rel (%p2240) target = $region48
      $region47: #{meta_conv2d.1} parent=43 // pred_region
        %s2243 = smul.u32 8, %s22
        %p2244 = scmp.lt.s32.totalorder %s21, 1
        %s2245 = scalar_select %p2244, %s21, 1
        %p2246 = scmp.lt.s32.totalorder %s2243, 7
        %s2247 = scalar_select %p2246, %s2243, 7
        %s2248 = smul.addr %s2245, 8
        %s2249 = sadd.s32 %s2247, %s2248
        %s2250 = smul.addr %s2249, 8
        %s2251 = scalar_lea.vmem %s4, %s2250
      $region48: #{meta_conv2d.1} parent=43 // pred_fallthru
        _
    $region44: #{meta_conv2d.1} parent=5 // pred_fallthru
      _
  $region6: #{meta_conv2d.1} parent=0 // loop_footer
    %s14 = sadd.s32 1, %s10
  $region7: #{meta_conv2d.1} parent=0 // loop_footer_branch
    %9 = sbr.rel target = $region3
  $region8: #{meta_conv2d.1} parent=0 // loop_exit
    _

</llo_original>
